<compile_context>
chip_gen: v7x
topology: tpu7x:2x2x1
jax: 0.10.0
libtpu: 0.0.40
codegen_flags: <defaults>
</compile_context>

<pallas_src>
import functools
import math

import jax
import jax.numpy as jnp
from jax import lax
from jax.experimental import pallas as pl
from jax.experimental.pallas import tpu as pltpu


def _lstm_kernel(xproj_ref, wh_ref, seq_ref, hT_ref, cT_ref, *, unroll):
    t_blk = pl.program_id(1)                 # time-block index (sequential axis)
    H = hT_ref.shape[-1]
    Tc = xproj_ref.shape[0]

    @pl.when(t_blk == 0)
    def _():
        hT_ref[...] = jnp.zeros_like(hT_ref)   # h fed into step 0 is zeros (ref semantics)
        cT_ref[...] = jnp.zeros_like(cT_ref)

    wh = wh_ref[...]                         # (H, 4H) resident weight (constant block index)

    carried = hT_ref[...]                    # running max from previous time blocks (zeros @ blk 0)
    c0 = cT_ref[...]
    # Seed the running max with -inf on the FIRST time block so the in-loop
    # update is an unconditional maximum (no per-step select); the matmul
    # input (h_in) is carried separately and starts at zeros on block 0.
    m0 = jnp.where(t_blk == 0, jnp.full_like(carried, -jnp.inf), carried)

    def step(tc, carry):
        h_in, m, c = carry
        # x_t @ Wx + b was hoisted out of the kernel (xproj), so a single
        # recurrent matmul per step (f32 accumulate on the MXU).
        gates = (jnp.dot(h_in.astype(wh.dtype), wh,
                         preferred_element_type=jnp.float32)
                 + xproj_ref[tc].astype(jnp.float32))
        # NOTE: for production sizes keep H a multiple of 128 (prefer 256 on
        # v6e/v7x) so these gate slices are lane-aligned vreg selects and the
        # per-step store below is an unmasked vst.
        f = jax.nn.sigmoid(gates[:, 0 * H:1 * H])
        i = jax.nn.sigmoid(gates[:, 1 * H:2 * H])
        g = jnp.tanh(gates[:, 2 * H:3 * H])
        o = jax.nn.sigmoid(gates[:, 3 * H:4 * H])
        c_new = f * c + i * g
        h_new = o * jnp.tanh(c_new)
        seq_ref[tc] = h_new.astype(seq_ref.dtype)    # per-step output: raw h_t
        m_new = jnp.maximum(m, h_new)                # unconditional running max
        return m_new, m_new, c_new                   # next step's h_in == running max

    _, m_f, c_f = lax.fori_loop(0, Tc, step, (carried, m0, c0), unroll=unroll)
    hT_ref[...] = m_f
    cT_ref[...] = c_f


def _tpu_vmem_and_cores():
    """(physical VMEM bytes per core, TensorCores per chip), with safe fallbacks."""
    vmem_cap = 64 * 1024 * 1024            # conservative: smallest across v5e/v6e/v7x
    num_tc = 1
    try:
        info = pltpu.get_tpu_info()
        vmem_cap = int(getattr(info, "vmem_capacity_bytes", vmem_cap) or vmem_cap)
        num_tc = int(getattr(info, "tensorcores_per_chip", 0)
                     or getattr(info, "num_cores", 0) or 0) or num_tc
    except Exception:
        pass
    # 64-MiB-VMEM parts (v7x class) have two TensorCores per chip.
    if num_tc <= 1 and vmem_cap <= 64 * 1024 * 1024:
        num_tc = 2
    return vmem_cap, num_tc


def _largest_divisor_leq(n, cap):
    cap = max(1, min(int(cap), n))
    for d in range(cap, 0, -1):
        if n % d == 0:
            return d
    return 1


def naive_lstm_pallas(x, Wf, bf, Wi, bi, Wc, bc, Wo, bo, *,
                      stream_dtype=jnp.float32,
                      param_dtype=jnp.float32,
                      time_block=None,
                      batch_block=None,
                      time_major_output=False,
                      single_buffer_weight=None):
    """x: (B, T, I).  Each W*: (I+H, H) with rows ordered [h; x]; b*: (H,).

    stream_dtype : dtype of the HBM-streamed xproj / hidden_seq (f32 for exact
                   validation, bf16 for production bandwidth / VMEM).
    param_dtype  : dtype of the resident recurrent weight Wh (bf16 = native
                   MXU rate); gate math and the h/C carries stay f32 always.
    """
    B, T, I = x.shape
    H = Wf.shape[1]
    stream_dtype = jnp.dtype(stream_dtype)
    param_dtype = jnp.dtype(param_dtype)

    # Fuse the four gate weights: columns [f | i | c | o], rows split [h; x].
    W_all = jnp.concatenate([Wf, Wi, Wc, Wo], axis=1)            # (H+I, 4H)
    Wh = W_all[:H, :].astype(param_dtype)                        # (H, 4H)  multiplies h
    Wx = W_all[H:, :]                                            # (I, 4H)  multiplies x_t
    b_all = jnp.concatenate([bf, bi, bc, bo], axis=0)            # (4H,)

    # Hoisted input projection: one big matmul over all timesteps, laid out
    # time-major so the kernel streams (Tc, Bb, 4H) blocks.  'highest' only in
    # the f32 validation mode; the bf16 path uses MXU-native precision.
    # TODO(synk): on bandwidth-starved parts (v5e) with 4H >> I, fuse this
    # projection into the kernel instead of materializing (T, B, 4H) in HBM.
    proj_precision = 'highest' if stream_dtype == jnp.float32 else None
    xproj = (jnp.einsum('bti,ig->tbg', x, Wx, precision=proj_precision)
             + b_all).astype(stream_dtype)                       # (T, B, 4H)

    # ---- Generation-aware sizing -------------------------------------------
    vmem_cap, num_tc = _tpu_vmem_and_cores()
    vmem_budget = (vmem_cap * 3) // 4      # ~96 MiB on 128-MiB parts, ~48 MiB on v7x

    # Batch blocking: shard the "parallel" batch axis across TensorCores on
    # 2-TC parts (v7x).  Sub-batch blocks must keep the sublane dim % 8 == 0.
    if batch_block is not None and B % batch_block == 0 and \
            (batch_block == B or batch_block % 8 == 0):
        Bb = batch_block
    elif num_tc >= 2 and B % num_tc == 0 and (B // num_tc) % 8 == 0:
        Bb = B // num_tc
    else:
        Bb = B
    nb = B // Bb

    # Time blocking: largest Tc (dividing T) whose double-buffered xproj + seq
    # blocks fit the budget alongside the resident weight and the carries.
    itm_s = stream_dtype.itemsize
    wh_bytes = 2 * H * 4 * H * param_dtype.itemsize     # worst case: 2 buffers
    carry_bytes = 2 * 2 * Bb * H * 4                    # f32 h_T / C_T blocks
    per_t_bytes = 2 * Bb * (4 * H + H) * itm_s          # dbl-buffered xproj + seq per step
    avail = vmem_budget - wh_bytes - carry_bytes - (4 << 20)   # slack for compiler scratch
    tc_cap = max(1, avail // per_t_bytes) if avail > 0 else 1
    if time_block is not None and T % time_block == 0:
        Tc = time_block
    else:
        Tc = _largest_divisor_leq(T, tc_cap)
    nt = T // Tc

    # Shape-aware unroll: fully unroll only when the per-step (Bb, 4H) gate
    # tile is small (latency-bound recurrence); big tiles already hide loop
    # overhead and full unrolling just bloats code / live ranges.
    unroll = (Bb * 4 * H <= 16384) and (Tc <= 32)

    kernel = functools.partial(_lstm_kernel, unroll=unroll)
    out_shape = (
        jax.ShapeDtypeStruct((T, B, H), stream_dtype),    # hidden_seq (time-major)
        jax.ShapeDtypeStruct((B, H), jnp.float32),        # h_T
        jax.ShapeDtypeStruct((B, H), jnp.float32),        # C_T
    )
    compiler_params = pltpu.CompilerParams(
        dimension_semantics=("parallel", "arbitrary"),
        vmem_limit_bytes=int(vmem_budget))

    def build_and_run(single_buf):
        if single_buf:
            # Constant block index + single buffer: fetched once during the
            # pipeline warm-up, never re-DMA'd, no 2x VMEM for a constant.
            wh_spec = pl.BlockSpec((H, 4 * H), lambda b, t: (0, 0),
                                   pipeline_mode=pl.Buffered(1))
        else:
            wh_spec = pl.BlockSpec((H, 4 * H), lambda b, t: (0, 0))
        grid_spec = pltpu.PrefetchScalarGridSpec(
            num_scalar_prefetch=0,
            grid=(nb, nt),                                       # sequential time axis last
            in_specs=[
                pl.BlockSpec((Tc, Bb, 4 * H), lambda b, t: (t, b, 0)),   # xproj block
                wh_spec,                                                  # resident Wh
            ],
            out_specs=[
                pl.BlockSpec((Tc, Bb, H), lambda b, t: (t, b, 0)),   # hidden_seq (time-major)
                pl.BlockSpec((Bb, H), lambda b, t: (b, 0)),          # h_T (resident carry)
                pl.BlockSpec((Bb, H), lambda b, t: (b, 0)),          # C_T (resident carry)
            ],
        )
        return pl.pallas_call(kernel, grid_spec=grid_spec, out_shape=out_shape,
                              compiler_params=compiler_params)(xproj, Wh)

    if single_buffer_weight is None:
        try:
            seq_tm, h_T, c_T = build_and_run(True)
        except Exception:
            # Pallas build without single-buffer pipeline_mode support: fall
            # back to the default (double-buffered) weight block.
            seq_tm, h_T, c_T = build_and_run(False)
    else:
        seq_tm, h_T, c_T = build_and_run(bool(single_buffer_weight))

    if time_major_output:
        hidden_seq = seq_tm                                 # (T, B, H): no extra HBM pass
    else:
        hidden_seq = jnp.transpose(seq_tm, (1, 0, 2))       # (B, T, H) like the module
    return hidden_seq, (h_T, c_T)


def naive_lstm_ref(x, Wf, bf, Wi, bi, Wc, bc, Wo, bo):
    """Pure-JAX reference replicating the PyTorch forward exactly."""
    B, T, I = x.shape
    H = Wf.shape[1]
    h = jnp.zeros((B, H), jnp.float32)
    c = jnp.zeros((B, H), jnp.float32)
    seq = []
    for t in range(T):
        xt = x[:, t, :]
        hx = jnp.concatenate([h, xt], axis=1)
        f = jax.nn.sigmoid(jnp.dot(hx, Wf, precision='highest') + bf)
        i = jax.nn.sigmoid(jnp.dot(hx, Wi, precision='highest') + bi)
        cc = jnp.tanh(jnp.dot(hx, Wc, precision='highest') + bc)
        o = jax.nn.sigmoid(jnp.dot(hx, Wo, precision='highest') + bo)
        c = f * c + i * cc
        ht = o * jnp.tanh(c)
        seq.append(ht)
        h = ht if t == 0 else jnp.max(jnp.stack(seq, axis=0), axis=0)
    hidden_seq = jnp.stack(seq, axis=1)                      # (B, T, H)
    return hidden_seq, (h, c)


if __name__ == "__main__":
    B, T, I, H = 2, 8, 4, 32
    key = jax.random.PRNGKey(0)
    stdv = 1.0 / math.sqrt(H)
    ks = jax.random.split(key, 9)
    Wf = jax.random.uniform(ks[0], (I + H, H), jnp.float32, -stdv, stdv)
    bf = jax.random.uniform(ks[1], (H,), jnp.float32, -stdv, stdv)
    Wi = jax.random.uniform(ks[2], (I + H, H), jnp.float32, -stdv, stdv)
    bi = jax.random.uniform(ks[3], (H,), jnp.float32, -stdv, stdv)
    Wc = jax.random.uniform(ks[4], (I + H, H), jnp.float32, -stdv, stdv)
    bc = jax.random.uniform(ks[5], (H,), jnp.float32, -stdv, stdv)
    Wo = jax.random.uniform(ks[6], (I + H, H), jnp.float32, -stdv, stdv)
    bo = jax.random.uniform(ks[7], (H,), jnp.float32, -stdv, stdv)
    x = jax.random.normal(ks[8], (B, T, I), jnp.float32)

    seq_ref, (h_ref, c_ref) = naive_lstm_ref(x, Wf, bf, Wi, bi, Wc, bc, Wo, bo)

    # f32 validation mode: must match the f32 reference tightly.
    seq_out, (h_T, c_T) = naive_lstm_pallas(x, Wf, bf, Wi, bi, Wc, bc, Wo, bo)
    jax.block_until_ready((seq_out, h_T, c_T))
    assert jnp.allclose(seq_out, seq_ref, atol=2e-5, rtol=2e-5)
    assert jnp.allclose(h_T, h_ref, atol=2e-5, rtol=2e-5)
    assert jnp.allclose(c_T, c_ref, atol=2e-5, rtol=2e-5)

    # bf16 production mode (bf16 HBM streams + bf16 resident weight, f32 gate
    # math): loose sanity check against the f32 reference.
    seq_b16, (h_b16, c_b16) = naive_lstm_pallas(
        x, Wf, bf, Wi, bi, Wc, bc, Wo, bo,
        stream_dtype=jnp.bfloat16, param_dtype=jnp.bfloat16)
    jax.block_until_ready((seq_b16, h_b16, c_b16))
    assert jnp.allclose(seq_b16.astype(jnp.float32), seq_ref, atol=1e-1, rtol=1e-1)
    assert jnp.allclose(h_b16, h_ref, atol=1e-1, rtol=1e-1)
    assert jnp.allclose(c_b16, c_ref, atol=1e-1, rtol=1e-1)

    print("KERNEL_OK")
</pallas_src>

<mosaic_0001>
module attributes {stable_mosaic.version = 11 : i64} {
  func.func @_lstm_kernel(%arg0: i32, %arg1: i32, %arg2: memref<8x2x128xf32, #tpu.memory_space<vmem>>, %arg3: memref<32x128xf32, #tpu.memory_space<vmem>>, %arg4: memref<8x2x32xf32, #tpu.memory_space<vmem>>, %arg5: memref<2x32xf32, #tpu.memory_space<vmem>>, %arg6: memref<2x32xf32, #tpu.memory_space<vmem>>) attributes {dimension_semantics = [#tpu.dimension_semantics<parallel>, #tpu.dimension_semantics<arbitrary>], iteration_bounds = array<i64: 1, 1>, scalar_prefetch = 0 : i64, scratch_operands = 0 : i64, tpu.core_type = #tpu.core_type<tc>, window_params = [{transform_indices = @transform_0, window_bounds = array<i64: 8, 2, 128>}, {pipeline_mode = #tpu.pipeline_mode<synchronous>, transform_indices = @transform_1, window_bounds = array<i64: 32, 128>}, {transform_indices = @transform_2, window_bounds = array<i64: 8, 2, 32>}, {transform_indices = @transform_3, window_bounds = array<i64: 2, 32>}, {transform_indices = @transform_4, window_bounds = array<i64: 2, 32>}]} {
    %c0_i32 = arith.constant 0 : i32
    %0 = arith.cmpi eq, %arg1, %c0_i32 : i32
    %1 = arith.extui %0 : i1 to i32
    %c0_i32_0 = arith.constant 0 : i32
    %2 = arith.cmpi ne, %1, %c0_i32_0 : i32
    scf.if %2 {
      %cst_76 = arith.constant 0.000000e+00 : f32
      %291 = vector.broadcast %cst_76 : f32 to vector<2x32xf32>
      %c0_77 = arith.constant 0 : index
      %c0_78 = arith.constant 0 : index
      %292 = vector.load %arg5[%c0_77, %c0_78] : memref<2x32xf32, #tpu.memory_space<vmem>>, vector<2x32xf32>
      tpu.vector_store %arg5[%c0_77, %c0_78], %291 {strides = array<i32>} : memref<2x32xf32, #tpu.memory_space<vmem>>, vector<2x32xf32>,
      %cst_79 = arith.constant 0.000000e+00 : f32
      %293 = vector.broadcast %cst_79 : f32 to vector<2x32xf32>
      %c0_80 = arith.constant 0 : index
      %c0_81 = arith.constant 0 : index
      %294 = vector.load %arg6[%c0_80, %c0_81] : memref<2x32xf32, #tpu.memory_space<vmem>>, vector<2x32xf32>
      tpu.vector_store %arg6[%c0_80, %c0_81], %293 {strides = array<i32>} : memref<2x32xf32, #tpu.memory_space<vmem>>, vector<2x32xf32>,
    } else {
    }
    %c0 = arith.constant 0 : index
    %c0_1 = arith.constant 0 : index
    %3 = vector.load %arg3[%c0, %c0_1] : memref<32x128xf32, #tpu.memory_space<vmem>>, vector<32x128xf32>
    %c0_2 = arith.constant 0 : index
    %c0_3 = arith.constant 0 : index
    %4 = vector.load %arg5[%c0_2, %c0_3] : memref<2x32xf32, #tpu.memory_space<vmem>>, vector<2x32xf32>
    %c0_4 = arith.constant 0 : index
    %c0_5 = arith.constant 0 : index
    %5 = vector.load %arg6[%c0_4, %c0_5] : memref<2x32xf32, #tpu.memory_space<vmem>>, vector<2x32xf32>
    %c0_i32_6 = arith.constant 0 : i32
    %6 = arith.cmpi eq, %arg1, %c0_i32_6 : i32
    %cst = arith.constant 0xFF800000 : f32
    %7 = vector.broadcast %cst : f32 to vector<2x32xf32>
    %8 = arith.select %6, %7, %4 : vector<2x32xf32>
    %c0_i32_7 = arith.constant 0 : i32
    %cst_8 = arith.constant dense<0.000000e+00> : vector<2x128xf32>
    %9 = tpu.matmul %4, %3, %cst_8 {dimension_numbers = #tpu.dot_dimension_numbers<[1], [0], [0], [1], [0, 0, 1, 1], [], []>} : vector<2x32xf32>, vector<32x128xf32>, vector<2x128xf32> -> vector<2x128xf32>
    %10 = arith.index_cast %c0_i32_7 : i32 to index
    %c0_9 = arith.constant 0 : index
    %c0_10 = arith.constant 0 : index
    %11 = vector.load %arg2[%10, %c0_9, %c0_10] : memref<8x2x128xf32, #tpu.memory_space<vmem>>, vector<1x2x128xf32>
    %12 = vector.shape_cast %11 : vector<1x2x128xf32> to vector<2x128xf32>
    %13 = arith.addf %9, %12 : vector<2x128xf32>
    %14 = vector.extract_strided_slice %13 {offsets = [0, 0], sizes = [2, 32], strides = [1, 1]} : vector<2x128xf32> to vector<2x32xf32>
    %15 = arith.negf %14 : vector<2x32xf32>
    %16 = math.exp %15 : vector<2x32xf32>
    %cst_11 = arith.constant 1.000000e+00 : f32
    %17 = vector.broadcast %cst_11 : f32 to vector<2x32xf32>
    %18 = arith.addf %17, %16 : vector<2x32xf32>
    %19 = arith.divf %17, %18 : vector<2x32xf32>
    %20 = vector.extract_strided_slice %13 {offsets = [0, 32], sizes = [2, 32], strides = [1, 1]} : vector<2x128xf32> to vector<2x32xf32>
    %21 = arith.negf %20 : vector<2x32xf32>
    %22 = math.exp %21 : vector<2x32xf32>
    %cst_12 = arith.constant 1.000000e+00 : f32
    %23 = vector.broadcast %cst_12 : f32 to vector<2x32xf32>
    %24 = arith.addf %23, %22 : vector<2x32xf32>
    %25 = arith.divf %23, %24 : vector<2x32xf32>
    %26 = vector.extract_strided_slice %13 {offsets = [0, 64], sizes = [2, 32], strides = [1, 1]} : vector<2x128xf32> to vector<2x32xf32>
    %27 = math.tanh %26 : vector<2x32xf32>
    %28 = vector.extract_strided_slice %13 {offsets = [0, 96], sizes = [2, 32], strides = [1, 1]} : vector<2x128xf32> to vector<2x32xf32>
    %29 = arith.negf %28 : vector<2x32xf32>
    %30 = math.exp %29 : vector<2x32xf32>
    %cst_13 = arith.constant 1.000000e+00 : f32
    %31 = vector.broadcast %cst_13 : f32 to vector<2x32xf32>
    %32 = arith.addf %31, %30 : vector<2x32xf32>
    %33 = arith.divf %31, %32 : vector<2x32xf32>
    %34 = arith.mulf %19, %5 : vector<2x32xf32>
    %35 = arith.mulf %25, %27 : vector<2x32xf32>
    %36 = arith.addf %34, %35 : vector<2x32xf32>
    %37 = math.tanh %36 : vector<2x32xf32>
    %38 = arith.mulf %33, %37 : vector<2x32xf32>
    %39 = arith.index_cast %c0_i32_7 : i32 to index
    %c0_14 = arith.constant 0 : index
    %c0_15 = arith.constant 0 : index
    %40 = vector.load %arg4[%39, %c0_14, %c0_15] : memref<8x2x32xf32, #tpu.memory_space<vmem>>, vector<1x2x32xf32>
    %41 = vector.shape_cast %40 : vector<1x2x32xf32> to vector<2x32xf32>
    %42 = vector.shape_cast %38 : vector<2x32xf32> to vector<1x2x32xf32>
    tpu.vector_store %arg4[%39, %c0_14, %c0_15], %42 {strides = array<i32>} : memref<8x2x32xf32, #tpu.memory_space<vmem>>, vector<1x2x32xf32>,
    %43 = arith.maximumf %8, %38 : vector<2x32xf32>
    %c1_i32 = arith.constant 1 : i32
    %cst_16 = arith.constant dense<0.000000e+00> : vector<2x128xf32>
    %44 = tpu.matmul %43, %3, %cst_16 {dimension_numbers = #tpu.dot_dimension_numbers<[1], [0], [0], [1], [0, 0, 1, 1], [], []>} : vector<2x32xf32>, vector<32x128xf32>, vector<2x128xf32> -> vector<2x128xf32>
    %45 = arith.index_cast %c1_i32 : i32 to index
    %c0_17 = arith.constant 0 : index
    %c0_18 = arith.constant 0 : index
    %46 = vector.load %arg2[%45, %c0_17, %c0_18] : memref<8x2x128xf32, #tpu.memory_space<vmem>>, vector<1x2x128xf32>
    %47 = vector.shape_cast %46 : vector<1x2x128xf32> to vector<2x128xf32>
    %48 = arith.addf %44, %47 : vector<2x128xf32>
    %49 = vector.extract_strided_slice %48 {offsets = [0, 0], sizes = [2, 32], strides = [1, 1]} : vector<2x128xf32> to vector<2x32xf32>
    %50 = arith.negf %49 : vector<2x32xf32>
    %51 = math.exp %50 : vector<2x32xf32>
    %cst_19 = arith.constant 1.000000e+00 : f32
    %52 = vector.broadcast %cst_19 : f32 to vector<2x32xf32>
    %53 = arith.addf %52, %51 : vector<2x32xf32>
    %54 = arith.divf %52, %53 : vector<2x32xf32>
    %55 = vector.extract_strided_slice %48 {offsets = [0, 32], sizes = [2, 32], strides = [1, 1]} : vector<2x128xf32> to vector<2x32xf32>
    %56 = arith.negf %55 : vector<2x32xf32>
    %57 = math.exp %56 : vector<2x32xf32>
    %cst_20 = arith.constant 1.000000e+00 : f32
    %58 = vector.broadcast %cst_20 : f32 to vector<2x32xf32>
    %59 = arith.addf %58, %57 : vector<2x32xf32>
    %60 = arith.divf %58, %59 : vector<2x32xf32>
    %61 = vector.extract_strided_slice %48 {offsets = [0, 64], sizes = [2, 32], strides = [1, 1]} : vector<2x128xf32> to vector<2x32xf32>
    %62 = math.tanh %61 : vector<2x32xf32>
    %63 = vector.extract_strided_slice %48 {offsets = [0, 96], sizes = [2, 32], strides = [1, 1]} : vector<2x128xf32> to vector<2x32xf32>
    %64 = arith.negf %63 : vector<2x32xf32>
    %65 = math.exp %64 : vector<2x32xf32>
    %cst_21 = arith.constant 1.000000e+00 : f32
    %66 = vector.broadcast %cst_21 : f32 to vector<2x32xf32>
    %67 = arith.addf %66, %65 : vector<2x32xf32>
    %68 = arith.divf %66, %67 : vector<2x32xf32>
    %69 = arith.mulf %54, %36 : vector<2x32xf32>
    %70 = arith.mulf %60, %62 : vector<2x32xf32>
    %71 = arith.addf %69, %70 : vector<2x32xf32>
    %72 = math.tanh %71 : vector<2x32xf32>
    %73 = arith.mulf %68, %72 : vector<2x32xf32>
    %74 = arith.index_cast %c1_i32 : i32 to index
    %c0_22 = arith.constant 0 : index
    %c0_23 = arith.constant 0 : index
    %75 = vector.load %arg4[%74, %c0_22, %c0_23] : memref<8x2x32xf32, #tpu.memory_space<vmem>>, vector<1x2x32xf32>
    %76 = vector.shape_cast %75 : vector<1x2x32xf32> to vector<2x32xf32>
    %77 = vector.shape_cast %73 : vector<2x32xf32> to vector<1x2x32xf32>
    tpu.vector_store %arg4[%74, %c0_22, %c0_23], %77 {strides = array<i32>} : memref<8x2x32xf32, #tpu.memory_space<vmem>>, vector<1x2x32xf32>,
    %78 = arith.maximumf %43, %73 : vector<2x32xf32>
    %c2_i32 = arith.constant 2 : i32
    %cst_24 = arith.constant dense<0.000000e+00> : vector<2x128xf32>
    %79 = tpu.matmul %78, %3, %cst_24 {dimension_numbers = #tpu.dot_dimension_numbers<[1], [0], [0], [1], [0, 0, 1, 1], [], []>} : vector<2x32xf32>, vector<32x128xf32>, vector<2x128xf32> -> vector<2x128xf32>
    %80 = arith.index_cast %c2_i32 : i32 to index
    %c0_25 = arith.constant 0 : index
    %c0_26 = arith.constant 0 : index
    %81 = vector.load %arg2[%80, %c0_25, %c0_26] : memref<8x2x128xf32, #tpu.memory_space<vmem>>, vector<1x2x128xf32>
    %82 = vector.shape_cast %81 : vector<1x2x128xf32> to vector<2x128xf32>
    %83 = arith.addf %79, %82 : vector<2x128xf32>
    %84 = vector.extract_strided_slice %83 {offsets = [0, 0], sizes = [2, 32], strides = [1, 1]} : vector<2x128xf32> to vector<2x32xf32>
    %85 = arith.negf %84 : vector<2x32xf32>
    %86 = math.exp %85 : vector<2x32xf32>
    %cst_27 = arith.constant 1.000000e+00 : f32
    %87 = vector.broadcast %cst_27 : f32 to vector<2x32xf32>
    %88 = arith.addf %87, %86 : vector<2x32xf32>
    %89 = arith.divf %87, %88 : vector<2x32xf32>
    %90 = vector.extract_strided_slice %83 {offsets = [0, 32], sizes = [2, 32], strides = [1, 1]} : vector<2x128xf32> to vector<2x32xf32>
    %91 = arith.negf %90 : vector<2x32xf32>
    %92 = math.exp %91 : vector<2x32xf32>
    %cst_28 = arith.constant 1.000000e+00 : f32
    %93 = vector.broadcast %cst_28 : f32 to vector<2x32xf32>
    %94 = arith.addf %93, %92 : vector<2x32xf32>
    %95 = arith.divf %93, %94 : vector<2x32xf32>
    %96 = vector.extract_strided_slice %83 {offsets = [0, 64], sizes = [2, 32], strides = [1, 1]} : vector<2x128xf32> to vector<2x32xf32>
    %97 = math.tanh %96 : vector<2x32xf32>
    %98 = vector.extract_strided_slice %83 {offsets = [0, 96], sizes = [2, 32], strides = [1, 1]} : vector<2x128xf32> to vector<2x32xf32>
    %99 = arith.negf %98 : vector<2x32xf32>
    %100 = math.exp %99 : vector<2x32xf32>
    %cst_29 = arith.constant 1.000000e+00 : f32
    %101 = vector.broadcast %cst_29 : f32 to vector<2x32xf32>
    %102 = arith.addf %101, %100 : vector<2x32xf32>
    %103 = arith.divf %101, %102 : vector<2x32xf32>
    %104 = arith.mulf %89, %71 : vector<2x32xf32>
    %105 = arith.mulf %95, %97 : vector<2x32xf32>
    %106 = arith.addf %104, %105 : vector<2x32xf32>
    %107 = math.tanh %106 : vector<2x32xf32>
    %108 = arith.mulf %103, %107 : vector<2x32xf32>
    %109 = arith.index_cast %c2_i32 : i32 to index
    %c0_30 = arith.constant 0 : index
    %c0_31 = arith.constant 0 : index
    %110 = vector.load %arg4[%109, %c0_30, %c0_31] : memref<8x2x32xf32, #tpu.memory_space<vmem>>, vector<1x2x32xf32>
    %111 = vector.shape_cast %110 : vector<1x2x32xf32> to vector<2x32xf32>
    %112 = vector.shape_cast %108 : vector<2x32xf32> to vector<1x2x32xf32>
    tpu.vector_store %arg4[%109, %c0_30, %c0_31], %112 {strides = array<i32>} : memref<8x2x32xf32, #tpu.memory_space<vmem>>, vector<1x2x32xf32>,
    %113 = arith.maximumf %78, %108 : vector<2x32xf32>
    %c3_i32 = arith.constant 3 : i32
    %cst_32 = arith.constant dense<0.000000e+00> : vector<2x128xf32>
    %114 = tpu.matmul %113, %3, %cst_32 {dimension_numbers = #tpu.dot_dimension_numbers<[1], [0], [0], [1], [0, 0, 1, 1], [], []>} : vector<2x32xf32>, vector<32x128xf32>, vector<2x128xf32> -> vector<2x128xf32>
    %115 = arith.index_cast %c3_i32 : i32 to index
    %c0_33 = arith.constant 0 : index
    %c0_34 = arith.constant 0 : index
    %116 = vector.load %arg2[%115, %c0_33, %c0_34] : memref<8x2x128xf32, #tpu.memory_space<vmem>>, vector<1x2x128xf32>
    %117 = vector.shape_cast %116 : vector<1x2x128xf32> to vector<2x128xf32>
    %118 = arith.addf %114, %117 : vector<2x128xf32>
    %119 = vector.extract_strided_slice %118 {offsets = [0, 0], sizes = [2, 32], strides = [1, 1]} : vector<2x128xf32> to vector<2x32xf32>
    %120 = arith.negf %119 : vector<2x32xf32>
    %121 = math.exp %120 : vector<2x32xf32>
    %cst_35 = arith.constant 1.000000e+00 : f32
    %122 = vector.broadcast %cst_35 : f32 to vector<2x32xf32>
    %123 = arith.addf %122, %121 : vector<2x32xf32>
    %124 = arith.divf %122, %123 : vector<2x32xf32>
    %125 = vector.extract_strided_slice %118 {offsets = [0, 32], sizes = [2, 32], strides = [1, 1]} : vector<2x128xf32> to vector<2x32xf32>
    %126 = arith.negf %125 : vector<2x32xf32>
    %127 = math.exp %126 : vector<2x32xf32>
    %cst_36 = arith.constant 1.000000e+00 : f32
    %128 = vector.broadcast %cst_36 : f32 to vector<2x32xf32>
    %129 = arith.addf %128, %127 : vector<2x32xf32>
    %130 = arith.divf %128, %129 : vector<2x32xf32>
    %131 = vector.extract_strided_slice %118 {offsets = [0, 64], sizes = [2, 32], strides = [1, 1]} : vector<2x128xf32> to vector<2x32xf32>
    %132 = math.tanh %131 : vector<2x32xf32>
    %133 = vector.extract_strided_slice %118 {offsets = [0, 96], sizes = [2, 32], strides = [1, 1]} : vector<2x128xf32> to vector<2x32xf32>
    %134 = arith.negf %133 : vector<2x32xf32>
    %135 = math.exp %134 : vector<2x32xf32>
    %cst_37 = arith.constant 1.000000e+00 : f32
    %136 = vector.broadcast %cst_37 : f32 to vector<2x32xf32>
    %137 = arith.addf %136, %135 : vector<2x32xf32>
    %138 = arith.divf %136, %137 : vector<2x32xf32>
    %139 = arith.mulf %124, %106 : vector<2x32xf32>
    %140 = arith.mulf %130, %132 : vector<2x32xf32>
    %141 = arith.addf %139, %140 : vector<2x32xf32>
    %142 = math.tanh %141 : vector<2x32xf32>
    %143 = arith.mulf %138, %142 : vector<2x32xf32>
    %144 = arith.index_cast %c3_i32 : i32 to index
    %c0_38 = arith.constant 0 : index
    %c0_39 = arith.constant 0 : index
    %145 = vector.load %arg4[%144, %c0_38, %c0_39] : memref<8x2x32xf32, #tpu.memory_space<vmem>>, vector<1x2x32xf32>
    %146 = vector.shape_cast %145 : vector<1x2x32xf32> to vector<2x32xf32>
    %147 = vector.shape_cast %143 : vector<2x32xf32> to vector<1x2x32xf32>
    tpu.vector_store %arg4[%144, %c0_38, %c0_39], %147 {strides = array<i32>} : memref<8x2x32xf32, #tpu.memory_space<vmem>>, vector<1x2x32xf32>,
    %148 = arith.maximumf %113, %143 : vector<2x32xf32>
    %c4_i32 = arith.constant 4 : i32
    %cst_40 = arith.constant dense<0.000000e+00> : vector<2x128xf32>
    %149 = tpu.matmul %148, %3, %cst_40 {dimension_numbers = #tpu.dot_dimension_numbers<[1], [0], [0], [1], [0, 0, 1, 1], [], []>} : vector<2x32xf32>, vector<32x128xf32>, vector<2x128xf32> -> vector<2x128xf32>
    %150 = arith.index_cast %c4_i32 : i32 to index
    %c0_41 = arith.constant 0 : index
    %c0_42 = arith.constant 0 : index
    %151 = vector.load %arg2[%150, %c0_41, %c0_42] : memref<8x2x128xf32, #tpu.memory_space<vmem>>, vector<1x2x128xf32>
    %152 = vector.shape_cast %151 : vector<1x2x128xf32> to vector<2x128xf32>
    %153 = arith.addf %149, %152 : vector<2x128xf32>
    %154 = vector.extract_strided_slice %153 {offsets = [0, 0], sizes = [2, 32], strides = [1, 1]} : vector<2x128xf32> to vector<2x32xf32>
    %155 = arith.negf %154 : vector<2x32xf32>
    %156 = math.exp %155 : vector<2x32xf32>
    %cst_43 = arith.constant 1.000000e+00 : f32
    %157 = vector.broadcast %cst_43 : f32 to vector<2x32xf32>
    %158 = arith.addf %157, %156 : vector<2x32xf32>
    %159 = arith.divf %157, %158 : vector<2x32xf32>
    %160 = vector.extract_strided_slice %153 {offsets = [0, 32], sizes = [2, 32], strides = [1, 1]} : vector<2x128xf32> to vector<2x32xf32>
    %161 = arith.negf %160 : vector<2x32xf32>
    %162 = math.exp %161 : vector<2x32xf32>
    %cst_44 = arith.constant 1.000000e+00 : f32
    %163 = vector.broadcast %cst_44 : f32 to vector<2x32xf32>
    %164 = arith.addf %163, %162 : vector<2x32xf32>
    %165 = arith.divf %163, %164 : vector<2x32xf32>
    %166 = vector.extract_strided_slice %153 {offsets = [0, 64], sizes = [2, 32], strides = [1, 1]} : vector<2x128xf32> to vector<2x32xf32>
    %167 = math.tanh %166 : vector<2x32xf32>
    %168 = vector.extract_strided_slice %153 {offsets = [0, 96], sizes = [2, 32], strides = [1, 1]} : vector<2x128xf32> to vector<2x32xf32>
    %169 = arith.negf %168 : vector<2x32xf32>
    %170 = math.exp %169 : vector<2x32xf32>
    %cst_45 = arith.constant 1.000000e+00 : f32
    %171 = vector.broadcast %cst_45 : f32 to vector<2x32xf32>
    %172 = arith.addf %171, %170 : vector<2x32xf32>
    %173 = arith.divf %171, %172 : vector<2x32xf32>
    %174 = arith.mulf %159, %141 : vector<2x32xf32>
    %175 = arith.mulf %165, %167 : vector<2x32xf32>
    %176 = arith.addf %174, %175 : vector<2x32xf32>
    %177 = math.tanh %176 : vector<2x32xf32>
    %178 = arith.mulf %173, %177 : vector<2x32xf32>
    %179 = arith.index_cast %c4_i32 : i32 to index
    %c0_46 = arith.constant 0 : index
    %c0_47 = arith.constant 0 : index
    %180 = vector.load %arg4[%179, %c0_46, %c0_47] : memref<8x2x32xf32, #tpu.memory_space<vmem>>, vector<1x2x32xf32>
    %181 = vector.shape_cast %180 : vector<1x2x32xf32> to vector<2x32xf32>
    %182 = vector.shape_cast %178 : vector<2x32xf32> to vector<1x2x32xf32>
    tpu.vector_store %arg4[%179, %c0_46, %c0_47], %182 {strides = array<i32>} : memref<8x2x32xf32, #tpu.memory_space<vmem>>, vector<1x2x32xf32>,
    %183 = arith.maximumf %148, %178 : vector<2x32xf32>
    %c5_i32 = arith.constant 5 : i32
    %cst_48 = arith.constant dense<0.000000e+00> : vector<2x128xf32>
    %184 = tpu.matmul %183, %3, %cst_48 {dimension_numbers = #tpu.dot_dimension_numbers<[1], [0], [0], [1], [0, 0, 1, 1], [], []>} : vector<2x32xf32>, vector<32x128xf32>, vector<2x128xf32> -> vector<2x128xf32>
    %185 = arith.index_cast %c5_i32 : i32 to index
    %c0_49 = arith.constant 0 : index
    %c0_50 = arith.constant 0 : index
    %186 = vector.load %arg2[%185, %c0_49, %c0_50] : memref<8x2x128xf32, #tpu.memory_space<vmem>>, vector<1x2x128xf32>
    %187 = vector.shape_cast %186 : vector<1x2x128xf32> to vector<2x128xf32>
    %188 = arith.addf %184, %187 : vector<2x128xf32>
    %189 = vector.extract_strided_slice %188 {offsets = [0, 0], sizes = [2, 32], strides = [1, 1]} : vector<2x128xf32> to vector<2x32xf32>
    %190 = arith.negf %189 : vector<2x32xf32>
    %191 = math.exp %190 : vector<2x32xf32>
    %cst_51 = arith.constant 1.000000e+00 : f32
    %192 = vector.broadcast %cst_51 : f32 to vector<2x32xf32>
    %193 = arith.addf %192, %191 : vector<2x32xf32>
    %194 = arith.divf %192, %193 : vector<2x32xf32>
    %195 = vector.extract_strided_slice %188 {offsets = [0, 32], sizes = [2, 32], strides = [1, 1]} : vector<2x128xf32> to vector<2x32xf32>
    %196 = arith.negf %195 : vector<2x32xf32>
    %197 = math.exp %196 : vector<2x32xf32>
    %cst_52 = arith.constant 1.000000e+00 : f32
    %198 = vector.broadcast %cst_52 : f32 to vector<2x32xf32>
    %199 = arith.addf %198, %197 : vector<2x32xf32>
    %200 = arith.divf %198, %199 : vector<2x32xf32>
    %201 = vector.extract_strided_slice %188 {offsets = [0, 64], sizes = [2, 32], strides = [1, 1]} : vector<2x128xf32> to vector<2x32xf32>
    %202 = math.tanh %201 : vector<2x32xf32>
    %203 = vector.extract_strided_slice %188 {offsets = [0, 96], sizes = [2, 32], strides = [1, 1]} : vector<2x128xf32> to vector<2x32xf32>
    %204 = arith.negf %203 : vector<2x32xf32>
    %205 = math.exp %204 : vector<2x32xf32>
    %cst_53 = arith.constant 1.000000e+00 : f32
    %206 = vector.broadcast %cst_53 : f32 to vector<2x32xf32>
    %207 = arith.addf %206, %205 : vector<2x32xf32>
    %208 = arith.divf %206, %207 : vector<2x32xf32>
    %209 = arith.mulf %194, %176 : vector<2x32xf32>
    %210 = arith.mulf %200, %202 : vector<2x32xf32>
    %211 = arith.addf %209, %210 : vector<2x32xf32>
    %212 = math.tanh %211 : vector<2x32xf32>
    %213 = arith.mulf %208, %212 : vector<2x32xf32>
    %214 = arith.index_cast %c5_i32 : i32 to index
    %c0_54 = arith.constant 0 : index
    %c0_55 = arith.constant 0 : index
    %215 = vector.load %arg4[%214, %c0_54, %c0_55] : memref<8x2x32xf32, #tpu.memory_space<vmem>>, vector<1x2x32xf32>
    %216 = vector.shape_cast %215 : vector<1x2x32xf32> to vector<2x32xf32>
    %217 = vector.shape_cast %213 : vector<2x32xf32> to vector<1x2x32xf32>
    tpu.vector_store %arg4[%214, %c0_54, %c0_55], %217 {strides = array<i32>} : memref<8x2x32xf32, #tpu.memory_space<vmem>>, vector<1x2x32xf32>,
    %218 = arith.maximumf %183, %213 : vector<2x32xf32>
    %c6_i32 = arith.constant 6 : i32
    %cst_56 = arith.constant dense<0.000000e+00> : vector<2x128xf32>
    %219 = tpu.matmul %218, %3, %cst_56 {dimension_numbers = #tpu.dot_dimension_numbers<[1], [0], [0], [1], [0, 0, 1, 1], [], []>} : vector<2x32xf32>, vector<32x128xf32>, vector<2x128xf32> -> vector<2x128xf32>
    %220 = arith.index_cast %c6_i32 : i32 to index
    %c0_57 = arith.constant 0 : index
    %c0_58 = arith.constant 0 : index
    %221 = vector.load %arg2[%220, %c0_57, %c0_58] : memref<8x2x128xf32, #tpu.memory_space<vmem>>, vector<1x2x128xf32>
    %222 = vector.shape_cast %221 : vector<1x2x128xf32> to vector<2x128xf32>
    %223 = arith.addf %219, %222 : vector<2x128xf32>
    %224 = vector.extract_strided_slice %223 {offsets = [0, 0], sizes = [2, 32], strides = [1, 1]} : vector<2x128xf32> to vector<2x32xf32>
    %225 = arith.negf %224 : vector<2x32xf32>
    %226 = math.exp %225 : vector<2x32xf32>
    %cst_59 = arith.constant 1.000000e+00 : f32
    %227 = vector.broadcast %cst_59 : f32 to vector<2x32xf32>
    %228 = arith.addf %227, %226 : vector<2x32xf32>
    %229 = arith.divf %227, %228 : vector<2x32xf32>
    %230 = vector.extract_strided_slice %223 {offsets = [0, 32], sizes = [2, 32], strides = [1, 1]} : vector<2x128xf32> to vector<2x32xf32>
    %231 = arith.negf %230 : vector<2x32xf32>
    %232 = math.exp %231 : vector<2x32xf32>
    %cst_60 = arith.constant 1.000000e+00 : f32
    %233 = vector.broadcast %cst_60 : f32 to vector<2x32xf32>
    %234 = arith.addf %233, %232 : vector<2x32xf32>
    %235 = arith.divf %233, %234 : vector<2x32xf32>
    %236 = vector.extract_strided_slice %223 {offsets = [0, 64], sizes = [2, 32], strides = [1, 1]} : vector<2x128xf32> to vector<2x32xf32>
    %237 = math.tanh %236 : vector<2x32xf32>
    %238 = vector.extract_strided_slice %223 {offsets = [0, 96], sizes = [2, 32], strides = [1, 1]} : vector<2x128xf32> to vector<2x32xf32>
    %239 = arith.negf %238 : vector<2x32xf32>
    %240 = math.exp %239 : vector<2x32xf32>
    %cst_61 = arith.constant 1.000000e+00 : f32
    %241 = vector.broadcast %cst_61 : f32 to vector<2x32xf32>
    %242 = arith.addf %241, %240 : vector<2x32xf32>
    %243 = arith.divf %241, %242 : vector<2x32xf32>
    %244 = arith.mulf %229, %211 : vector<2x32xf32>
    %245 = arith.mulf %235, %237 : vector<2x32xf32>
    %246 = arith.addf %244, %245 : vector<2x32xf32>
    %247 = math.tanh %246 : vector<2x32xf32>
    %248 = arith.mulf %243, %247 : vector<2x32xf32>
    %249 = arith.index_cast %c6_i32 : i32 to index
    %c0_62 = arith.constant 0 : index
    %c0_63 = arith.constant 0 : index
    %250 = vector.load %arg4[%249, %c0_62, %c0_63] : memref<8x2x32xf32, #tpu.memory_space<vmem>>, vector<1x2x32xf32>
    %251 = vector.shape_cast %250 : vector<1x2x32xf32> to vector<2x32xf32>
    %252 = vector.shape_cast %248 : vector<2x32xf32> to vector<1x2x32xf32>
    tpu.vector_store %arg4[%249, %c0_62, %c0_63], %252 {strides = array<i32>} : memref<8x2x32xf32, #tpu.memory_space<vmem>>, vector<1x2x32xf32>,
    %253 = arith.maximumf %218, %248 : vector<2x32xf32>
    %c7_i32 = arith.constant 7 : i32
    %cst_64 = arith.constant dense<0.000000e+00> : vector<2x128xf32>
    %254 = tpu.matmul %253, %3, %cst_64 {dimension_numbers = #tpu.dot_dimension_numbers<[1], [0], [0], [1], [0, 0, 1, 1], [], []>} : vector<2x32xf32>, vector<32x128xf32>, vector<2x128xf32> -> vector<2x128xf32>
    %255 = arith.index_cast %c7_i32 : i32 to index
    %c0_65 = arith.constant 0 : index
    %c0_66 = arith.constant 0 : index
    %256 = vector.load %arg2[%255, %c0_65, %c0_66] : memref<8x2x128xf32, #tpu.memory_space<vmem>>, vector<1x2x128xf32>
    %257 = vector.shape_cast %256 : vector<1x2x128xf32> to vector<2x128xf32>
    %258 = arith.addf %254, %257 : vector<2x128xf32>
    %259 = vector.extract_strided_slice %258 {offsets = [0, 0], sizes = [2, 32], strides = [1, 1]} : vector<2x128xf32> to vector<2x32xf32>
    %260 = arith.negf %259 : vector<2x32xf32>
    %261 = math.exp %260 : vector<2x32xf32>
    %cst_67 = arith.constant 1.000000e+00 : f32
    %262 = vector.broadcast %cst_67 : f32 to vector<2x32xf32>
    %263 = arith.addf %262, %261 : vector<2x32xf32>
    %264 = arith.divf %262, %263 : vector<2x32xf32>
    %265 = vector.extract_strided_slice %258 {offsets = [0, 32], sizes = [2, 32], strides = [1, 1]} : vector<2x128xf32> to vector<2x32xf32>
    %266 = arith.negf %265 : vector<2x32xf32>
    %267 = math.exp %266 : vector<2x32xf32>
    %cst_68 = arith.constant 1.000000e+00 : f32
    %268 = vector.broadcast %cst_68 : f32 to vector<2x32xf32>
    %269 = arith.addf %268, %267 : vector<2x32xf32>
    %270 = arith.divf %268, %269 : vector<2x32xf32>
    %271 = vector.extract_strided_slice %258 {offsets = [0, 64], sizes = [2, 32], strides = [1, 1]} : vector<2x128xf32> to vector<2x32xf32>
    %272 = math.tanh %271 : vector<2x32xf32>
    %273 = vector.extract_strided_slice %258 {offsets = [0, 96], sizes = [2, 32], strides = [1, 1]} : vector<2x128xf32> to vector<2x32xf32>
    %274 = arith.negf %273 : vector<2x32xf32>
    %275 = math.exp %274 : vector<2x32xf32>
    %cst_69 = arith.constant 1.000000e+00 : f32
    %276 = vector.broadcast %cst_69 : f32 to vector<2x32xf32>
    %277 = arith.addf %276, %275 : vector<2x32xf32>
    %278 = arith.divf %276, %277 : vector<2x32xf32>
    %279 = arith.mulf %264, %246 : vector<2x32xf32>
    %280 = arith.mulf %270, %272 : vector<2x32xf32>
    %281 = arith.addf %279, %280 : vector<2x32xf32>
    %282 = math.tanh %281 : vector<2x32xf32>
    %283 = arith.mulf %278, %282 : vector<2x32xf32>
    %284 = arith.index_cast %c7_i32 : i32 to index
    %c0_70 = arith.constant 0 : index
    %c0_71 = arith.constant 0 : index
    %285 = vector.load %arg4[%284, %c0_70, %c0_71] : memref<8x2x32xf32, #tpu.memory_space<vmem>>, vector<1x2x32xf32>
    %286 = vector.shape_cast %285 : vector<1x2x32xf32> to vector<2x32xf32>
    %287 = vector.shape_cast %283 : vector<2x32xf32> to vector<1x2x32xf32>
    tpu.vector_store %arg4[%284, %c0_70, %c0_71], %287 {strides = array<i32>} : memref<8x2x32xf32, #tpu.memory_space<vmem>>, vector<1x2x32xf32>,
    %288 = arith.maximumf %253, %283 : vector<2x32xf32>
    %c8_i32 = arith.constant 8 : i32
    %c0_72 = arith.constant 0 : index
    %c0_73 = arith.constant 0 : index
    %289 = vector.load %arg5[%c0_72, %c0_73] : memref<2x32xf32, #tpu.memory_space<vmem>>, vector<2x32xf32>
    tpu.vector_store %arg5[%c0_72, %c0_73], %288 {strides = array<i32>} : memref<2x32xf32, #tpu.memory_space<vmem>>, vector<2x32xf32>,
    %c0_74 = arith.constant 0 : index
    %c0_75 = arith.constant 0 : index
    %290 = vector.load %arg6[%c0_74, %c0_75] : memref<2x32xf32, #tpu.memory_space<vmem>>, vector<2x32xf32>
    tpu.vector_store %arg6[%c0_74, %c0_75], %281 {strides = array<i32>} : memref<2x32xf32, #tpu.memory_space<vmem>>, vector<2x32xf32>,
    return
  }
  func.func @transform_0(%arg0: i32, %arg1: i32) -> (i32, i32, i32) {
    %c0_i32 = arith.constant 0 : i32
    %c0_i32_0 = arith.constant 0 : i32
    return %arg1, %arg0, %c0_i32 : i32, i32, i32
  }
  func.func @transform_1(%arg0: i32, %arg1: i32) -> (i32, i32) {
    %c0_i32 = arith.constant 0 : i32
    %c0_i32_0 = arith.constant 0 : i32
    %c0_i32_1 = arith.constant 0 : i32
    return %c0_i32, %c0_i32_0 : i32, i32
  }
  func.func @transform_2(%arg0: i32, %arg1: i32) -> (i32, i32, i32) {
    %c0_i32 = arith.constant 0 : i32
    %c0_i32_0 = arith.constant 0 : i32
    return %arg1, %arg0, %c0_i32 : i32, i32, i32
  }
  func.func @transform_3(%arg0: i32, %arg1: i32) -> (i32, i32) {
    %c0_i32 = arith.constant 0 : i32
    %c0_i32_0 = arith.constant 0 : i32
    return %arg0, %c0_i32 : i32, i32
  }
  func.func @transform_4(%arg0: i32, %arg1: i32) -> (i32, i32) {
    %c0_i32 = arith.constant 0 : i32
    %c0_i32_0 = arith.constant 0 : i32
    return %arg0, %c0_i32 : i32, i32
  }
}

module attributes {stable_mosaic.version = 11 : i64} {
  func.func @_lstm_kernel(%arg0: i32, %arg1: i32, %arg2: memref<8x2x128xf32, #tpu.memory_space<vmem>>, %arg3: memref<32x128xf32, #tpu.memory_space<vmem>>, %arg4: memref<8x2x32xf32, #tpu.memory_space<vmem>>, %arg5: memref<2x32xf32, #tpu.memory_space<vmem>>, %arg6: memref<2x32xf32, #tpu.memory_space<vmem>>) attributes {dimension_semantics = [#tpu.dimension_semantics<parallel>, #tpu.dimension_semantics<arbitrary>], iteration_bounds = array<i64: 1, 1>, scalar_prefetch = 0 : i64, scratch_operands = 0 : i64, tpu.core_type = #tpu.core_type<tc>, window_params = [{transform_indices = @transform_0, window_bounds = array<i64: 8, 2, 128>}, {pipeline_mode = #tpu.pipeline_mode<synchronous>, transform_indices = @transform_1, window_bounds = array<i64: 32, 128>}, {transform_indices = @transform_2, window_bounds = array<i64: 8, 2, 32>}, {transform_indices = @transform_3, window_bounds = array<i64: 2, 32>}, {transform_indices = @transform_4, window_bounds = array<i64: 2, 32>}]} {
    %c0_i32 = arith.constant 0 : i32
    %0 = arith.cmpi eq, %arg1, %c0_i32 : i32
    %1 = arith.extui %0 : i1 to i32
    %c0_i32_0 = arith.constant 0 : i32
    %2 = arith.cmpi ne, %1, %c0_i32_0 : i32
    scf.if %2 {
      %cst_76 = arith.constant 0.000000e+00 : f32
      %291 = vector.broadcast %cst_76 : f32 to vector<2x32xf32>
      %c0_77 = arith.constant 0 : index
      %c0_78 = arith.constant 0 : index
      %292 = vector.load %arg5[%c0_77, %c0_78] : memref<2x32xf32, #tpu.memory_space<vmem>>, vector<2x32xf32>
      tpu.vector_store %arg5[%c0_77, %c0_78], %291 {strides = array<i32>} : memref<2x32xf32, #tpu.memory_space<vmem>>, vector<2x32xf32>,
      %cst_79 = arith.constant 0.000000e+00 : f32
      %293 = vector.broadcast %cst_79 : f32 to vector<2x32xf32>
      %c0_80 = arith.constant 0 : index
      %c0_81 = arith.constant 0 : index
      %294 = vector.load %arg6[%c0_80, %c0_81] : memref<2x32xf32, #tpu.memory_space<vmem>>, vector<2x32xf32>
      tpu.vector_store %arg6[%c0_80, %c0_81], %293 {strides = array<i32>} : memref<2x32xf32, #tpu.memory_space<vmem>>, vector<2x32xf32>,
    } else {
    }
    %c0 = arith.constant 0 : index
    %c0_1 = arith.constant 0 : index
    %3 = vector.load %arg3[%c0, %c0_1] : memref<32x128xf32, #tpu.memory_space<vmem>>, vector<32x128xf32>
    %c0_2 = arith.constant 0 : index
    %c0_3 = arith.constant 0 : index
    %4 = vector.load %arg5[%c0_2, %c0_3] : memref<2x32xf32, #tpu.memory_space<vmem>>, vector<2x32xf32>
    %c0_4 = arith.constant 0 : index
    %c0_5 = arith.constant 0 : index
    %5 = vector.load %arg6[%c0_4, %c0_5] : memref<2x32xf32, #tpu.memory_space<vmem>>, vector<2x32xf32>
    %c0_i32_6 = arith.constant 0 : i32
    %6 = arith.cmpi eq, %arg1, %c0_i32_6 : i32
    %cst = arith.constant 0xFF800000 : f32
    %7 = vector.broadcast %cst : f32 to vector<2x32xf32>
    %8 = arith.select %6, %7, %4 : vector<2x32xf32>
    %c0_i32_7 = arith.constant 0 : i32
    %cst_8 = arith.constant dense<0.000000e+00> : vector<2x128xf32>
    %9 = tpu.matmul %4, %3, %cst_8 {dimension_numbers = #tpu.dot_dimension_numbers<[1], [0], [0], [1], [0, 0, 1, 1], [], []>} : vector<2x32xf32>, vector<32x128xf32>, vector<2x128xf32> -> vector<2x128xf32>
    %10 = arith.index_cast %c0_i32_7 : i32 to index
    %c0_9 = arith.constant 0 : index
    %c0_10 = arith.constant 0 : index
    %11 = vector.load %arg2[%10, %c0_9, %c0_10] : memref<8x2x128xf32, #tpu.memory_space<vmem>>, vector<1x2x128xf32>
    %12 = vector.shape_cast %11 : vector<1x2x128xf32> to vector<2x128xf32>
    %13 = arith.addf %9, %12 : vector<2x128xf32>
    %14 = vector.extract_strided_slice %13 {offsets = [0, 0], sizes = [2, 32], strides = [1, 1]} : vector<2x128xf32> to vector<2x32xf32>
    %15 = arith.negf %14 : vector<2x32xf32>
    %16 = math.exp %15 : vector<2x32xf32>
    %cst_11 = arith.constant 1.000000e+00 : f32
    %17 = vector.broadcast %cst_11 : f32 to vector<2x32xf32>
    %18 = arith.addf %17, %16 : vector<2x32xf32>
    %19 = arith.divf %17, %18 : vector<2x32xf32>
    %20 = vector.extract_strided_slice %13 {offsets = [0, 32], sizes = [2, 32], strides = [1, 1]} : vector<2x128xf32> to vector<2x32xf32>
    %21 = arith.negf %20 : vector<2x32xf32>
    %22 = math.exp %21 : vector<2x32xf32>
    %cst_12 = arith.constant 1.000000e+00 : f32
    %23 = vector.broadcast %cst_12 : f32 to vector<2x32xf32>
    %24 = arith.addf %23, %22 : vector<2x32xf32>
    %25 = arith.divf %23, %24 : vector<2x32xf32>
    %26 = vector.extract_strided_slice %13 {offsets = [0, 64], sizes = [2, 32], strides = [1, 1]} : vector<2x128xf32> to vector<2x32xf32>
    %27 = math.tanh %26 : vector<2x32xf32>
    %28 = vector.extract_strided_slice %13 {offsets = [0, 96], sizes = [2, 32], strides = [1, 1]} : vector<2x128xf32> to vector<2x32xf32>
    %29 = arith.negf %28 : vector<2x32xf32>
    %30 = math.exp %29 : vector<2x32xf32>
    %cst_13 = arith.constant 1.000000e+00 : f32
    %31 = vector.broadcast %cst_13 : f32 to vector<2x32xf32>
    %32 = arith.addf %31, %30 : vector<2x32xf32>
    %33 = arith.divf %31, %32 : vector<2x32xf32>
    %34 = arith.mulf %19, %5 : vector<2x32xf32>
    %35 = arith.mulf %25, %27 : vector<2x32xf32>
    %36 = arith.addf %34, %35 : vector<2x32xf32>
    %37 = math.tanh %36 : vector<2x32xf32>
    %38 = arith.mulf %33, %37 : vector<2x32xf32>
    %39 = arith.index_cast %c0_i32_7 : i32 to index
    %c0_14 = arith.constant 0 : index
    %c0_15 = arith.constant 0 : index
    %40 = vector.load %arg4[%39, %c0_14, %c0_15] : memref<8x2x32xf32, #tpu.memory_space<vmem>>, vector<1x2x32xf32>
    %41 = vector.shape_cast %40 : vector<1x2x32xf32> to vector<2x32xf32>
    %42 = vector.shape_cast %38 : vector<2x32xf32> to vector<1x2x32xf32>
    tpu.vector_store %arg4[%39, %c0_14, %c0_15], %42 {strides = array<i32>} : memref<8x2x32xf32, #tpu.memory_space<vmem>>, vector<1x2x32xf32>,
    %43 = arith.maximumf %8, %38 : vector<2x32xf32>
    %c1_i32 = arith.constant 1 : i32
    %cst_16 = arith.constant dense<0.000000e+00> : vector<2x128xf32>
    %44 = tpu.matmul %43, %3, %cst_16 {dimension_numbers = #tpu.dot_dimension_numbers<[1], [0], [0], [1], [0, 0, 1, 1], [], []>} : vector<2x32xf32>, vector<32x128xf32>, vector<2x128xf32> -> vector<2x128xf32>
    %45 = arith.index_cast %c1_i32 : i32 to index
    %c0_17 = arith.constant 0 : index
    %c0_18 = arith.constant 0 : index
    %46 = vector.load %arg2[%45, %c0_17, %c0_18] : memref<8x2x128xf32, #tpu.memory_space<vmem>>, vector<1x2x128xf32>
    %47 = vector.shape_cast %46 : vector<1x2x128xf32> to vector<2x128xf32>
    %48 = arith.addf %44, %47 : vector<2x128xf32>
    %49 = vector.extract_strided_slice %48 {offsets = [0, 0], sizes = [2, 32], strides = [1, 1]} : vector<2x128xf32> to vector<2x32xf32>
    %50 = arith.negf %49 : vector<2x32xf32>
    %51 = math.exp %50 : vector<2x32xf32>
    %cst_19 = arith.constant 1.000000e+00 : f32
    %52 = vector.broadcast %cst_19 : f32 to vector<2x32xf32>
    %53 = arith.addf %52, %51 : vector<2x32xf32>
    %54 = arith.divf %52, %53 : vector<2x32xf32>
    %55 = vector.extract_strided_slice %48 {offsets = [0, 32], sizes = [2, 32], strides = [1, 1]} : vector<2x128xf32> to vector<2x32xf32>
    %56 = arith.negf %55 : vector<2x32xf32>
    %57 = math.exp %56 : vector<2x32xf32>
    %cst_20 = arith.constant 1.000000e+00 : f32
    %58 = vector.broadcast %cst_20 : f32 to vector<2x32xf32>
    %59 = arith.addf %58, %57 : vector<2x32xf32>
    %60 = arith.divf %58, %59 : vector<2x32xf32>
    %61 = vector.extract_strided_slice %48 {offsets = [0, 64], sizes = [2, 32], strides = [1, 1]} : vector<2x128xf32> to vector<2x32xf32>
    %62 = math.tanh %61 : vector<2x32xf32>
    %63 = vector.extract_strided_slice %48 {offsets = [0, 96], sizes = [2, 32], strides = [1, 1]} : vector<2x128xf32> to vector<2x32xf32>
    %64 = arith.negf %63 : vector<2x32xf32>
    %65 = math.exp %64 : vector<2x32xf32>
    %cst_21 = arith.constant 1.000000e+00 : f32
    %66 = vector.broadcast %cst_21 : f32 to vector<2x32xf32>
    %67 = arith.addf %66, %65 : vector<2x32xf32>
    %68 = arith.divf %66, %67 : vector<2x32xf32>
    %69 = arith.mulf %54, %36 : vector<2x32xf32>
    %70 = arith.mulf %60, %62 : vector<2x32xf32>
    %71 = arith.addf %69, %70 : vector<2x32xf32>
    %72 = math.tanh %71 : vector<2x32xf32>
    %73 = arith.mulf %68, %72 : vector<2x32xf32>
    %74 = arith.index_cast %c1_i32 : i32 to index
    %c0_22 = arith.constant 0 : index
    %c0_23 = arith.constant 0 : index
    %75 = vector.load %arg4[%74, %c0_22, %c0_23] : memref<8x2x32xf32, #tpu.memory_space<vmem>>, vector<1x2x32xf32>
    %76 = vector.shape_cast %75 : vector<1x2x32xf32> to vector<2x32xf32>
    %77 = vector.shape_cast %73 : vector<2x32xf32> to vector<1x2x32xf32>
    tpu.vector_store %arg4[%74, %c0_22, %c0_23], %77 {strides = array<i32>} : memref<8x2x32xf32, #tpu.memory_space<vmem>>, vector<1x2x32xf32>,
    %78 = arith.maximumf %43, %73 : vector<2x32xf32>
    %c2_i32 = arith.constant 2 : i32
    %cst_24 = arith.constant dense<0.000000e+00> : vector<2x128xf32>
    %79 = tpu.matmul %78, %3, %cst_24 {dimension_numbers = #tpu.dot_dimension_numbers<[1], [0], [0], [1], [0, 0, 1, 1], [], []>} : vector<2x32xf32>, vector<32x128xf32>, vector<2x128xf32> -> vector<2x128xf32>
    %80 = arith.index_cast %c2_i32 : i32 to index
    %c0_25 = arith.constant 0 : index
    %c0_26 = arith.constant 0 : index
    %81 = vector.load %arg2[%80, %c0_25, %c0_26] : memref<8x2x128xf32, #tpu.memory_space<vmem>>, vector<1x2x128xf32>
    %82 = vector.shape_cast %81 : vector<1x2x128xf32> to vector<2x128xf32>
    %83 = arith.addf %79, %82 : vector<2x128xf32>
    %84 = vector.extract_strided_slice %83 {offsets = [0, 0], sizes = [2, 32], strides = [1, 1]} : vector<2x128xf32> to vector<2x32xf32>
    %85 = arith.negf %84 : vector<2x32xf32>
    %86 = math.exp %85 : vector<2x32xf32>
    %cst_27 = arith.constant 1.000000e+00 : f32
    %87 = vector.broadcast %cst_27 : f32 to vector<2x32xf32>
    %88 = arith.addf %87, %86 : vector<2x32xf32>
    %89 = arith.divf %87, %88 : vector<2x32xf32>
    %90 = vector.extract_strided_slice %83 {offsets = [0, 32], sizes = [2, 32], strides = [1, 1]} : vector<2x128xf32> to vector<2x32xf32>
    %91 = arith.negf %90 : vector<2x32xf32>
    %92 = math.exp %91 : vector<2x32xf32>
    %cst_28 = arith.constant 1.000000e+00 : f32
    %93 = vector.broadcast %cst_28 : f32 to vector<2x32xf32>
    %94 = arith.addf %93, %92 : vector<2x32xf32>
    %95 = arith.divf %93, %94 : vector<2x32xf32>
    %96 = vector.extract_strided_slice %83 {offsets = [0, 64], sizes = [2, 32], strides = [1, 1]} : vector<2x128xf32> to vector<2x32xf32>
    %97 = math.tanh %96 : vector<2x32xf32>
    %98 = vector.extract_strided_slice %83 {offsets = [0, 96], sizes = [2, 32], strides = [1, 1]} : vector<2x128xf32> to vector<2x32xf32>
    %99 = arith.negf %98 : vector<2x32xf32>
    %100 = math.exp %99 : vector<2x32xf32>
    %cst_29 = arith.constant 1.000000e+00 : f32
    %101 = vector.broadcast %cst_29 : f32 to vector<2x32xf32>
    %102 = arith.addf %101, %100 : vector<2x32xf32>
    %103 = arith.divf %101, %102 : vector<2x32xf32>
    %104 = arith.mulf %89, %71 : vector<2x32xf32>
    %105 = arith.mulf %95, %97 : vector<2x32xf32>
    %106 = arith.addf %104, %105 : vector<2x32xf32>
    %107 = math.tanh %106 : vector<2x32xf32>
    %108 = arith.mulf %103, %107 : vector<2x32xf32>
    %109 = arith.index_cast %c2_i32 : i32 to index
    %c0_30 = arith.constant 0 : index
    %c0_31 = arith.constant 0 : index
    %110 = vector.load %arg4[%109, %c0_30, %c0_31] : memref<8x2x32xf32, #tpu.memory_space<vmem>>, vector<1x2x32xf32>
    %111 = vector.shape_cast %110 : vector<1x2x32xf32> to vector<2x32xf32>
    %112 = vector.shape_cast %108 : vector<2x32xf32> to vector<1x2x32xf32>
    tpu.vector_store %arg4[%109, %c0_30, %c0_31], %112 {strides = array<i32>} : memref<8x2x32xf32, #tpu.memory_space<vmem>>, vector<1x2x32xf32>,
    %113 = arith.maximumf %78, %108 : vector<2x32xf32>
    %c3_i32 = arith.constant 3 : i32
    %cst_32 = arith.constant dense<0.000000e+00> : vector<2x128xf32>
    %114 = tpu.matmul %113, %3, %cst_32 {dimension_numbers = #tpu.dot_dimension_numbers<[1], [0], [0], [1], [0, 0, 1, 1], [], []>} : vector<2x32xf32>, vector<32x128xf32>, vector<2x128xf32> -> vector<2x128xf32>
    %115 = arith.index_cast %c3_i32 : i32 to index
    %c0_33 = arith.constant 0 : index
    %c0_34 = arith.constant 0 : index
    %116 = vector.load %arg2[%115, %c0_33, %c0_34] : memref<8x2x128xf32, #tpu.memory_space<vmem>>, vector<1x2x128xf32>
    %117 = vector.shape_cast %116 : vector<1x2x128xf32> to vector<2x128xf32>
    %118 = arith.addf %114, %117 : vector<2x128xf32>
    %119 = vector.extract_strided_slice %118 {offsets = [0, 0], sizes = [2, 32], strides = [1, 1]} : vector<2x128xf32> to vector<2x32xf32>
    %120 = arith.negf %119 : vector<2x32xf32>
    %121 = math.exp %120 : vector<2x32xf32>
    %cst_35 = arith.constant 1.000000e+00 : f32
    %122 = vector.broadcast %cst_35 : f32 to vector<2x32xf32>
    %123 = arith.addf %122, %121 : vector<2x32xf32>
    %124 = arith.divf %122, %123 : vector<2x32xf32>
    %125 = vector.extract_strided_slice %118 {offsets = [0, 32], sizes = [2, 32], strides = [1, 1]} : vector<2x128xf32> to vector<2x32xf32>
    %126 = arith.negf %125 : vector<2x32xf32>
    %127 = math.exp %126 : vector<2x32xf32>
    %cst_36 = arith.constant 1.000000e+00 : f32
    %128 = vector.broadcast %cst_36 : f32 to vector<2x32xf32>
    %129 = arith.addf %128, %127 : vector<2x32xf32>
    %130 = arith.divf %128, %129 : vector<2x32xf32>
    %131 = vector.extract_strided_slice %118 {offsets = [0, 64], sizes = [2, 32], strides = [1, 1]} : vector<2x128xf32> to vector<2x32xf32>
    %132 = math.tanh %131 : vector<2x32xf32>
    %133 = vector.extract_strided_slice %118 {offsets = [0, 96], sizes = [2, 32], strides = [1, 1]} : vector<2x128xf32> to vector<2x32xf32>
    %134 = arith.negf %133 : vector<2x32xf32>
    %135 = math.exp %134 : vector<2x32xf32>
    %cst_37 = arith.constant 1.000000e+00 : f32
    %136 = vector.broadcast %cst_37 : f32 to vector<2x32xf32>
    %137 = arith.addf %136, %135 : vector<2x32xf32>
    %138 = arith.divf %136, %137 : vector<2x32xf32>
    %139 = arith.mulf %124, %106 : vector<2x32xf32>
    %140 = arith.mulf %130, %132 : vector<2x32xf32>
    %141 = arith.addf %139, %140 : vector<2x32xf32>
    %142 = math.tanh %141 : vector<2x32xf32>
    %143 = arith.mulf %138, %142 : vector<2x32xf32>
    %144 = arith.index_cast %c3_i32 : i32 to index
    %c0_38 = arith.constant 0 : index
    %c0_39 = arith.constant 0 : index
    %145 = vector.load %arg4[%144, %c0_38, %c0_39] : memref<8x2x32xf32, #tpu.memory_space<vmem>>, vector<1x2x32xf32>
    %146 = vector.shape_cast %145 : vector<1x2x32xf32> to vector<2x32xf32>
    %147 = vector.shape_cast %143 : vector<2x32xf32> to vector<1x2x32xf32>
    tpu.vector_store %arg4[%144, %c0_38, %c0_39], %147 {strides = array<i32>} : memref<8x2x32xf32, #tpu.memory_space<vmem>>, vector<1x2x32xf32>,
    %148 = arith.maximumf %113, %143 : vector<2x32xf32>
    %c4_i32 = arith.constant 4 : i32
    %cst_40 = arith.constant dense<0.000000e+00> : vector<2x128xf32>
    %149 = tpu.matmul %148, %3, %cst_40 {dimension_numbers = #tpu.dot_dimension_numbers<[1], [0], [0], [1], [0, 0, 1, 1], [], []>} : vector<2x32xf32>, vector<32x128xf32>, vector<2x128xf32> -> vector<2x128xf32>
    %150 = arith.index_cast %c4_i32 : i32 to index
    %c0_41 = arith.constant 0 : index
    %c0_42 = arith.constant 0 : index
    %151 = vector.load %arg2[%150, %c0_41, %c0_42] : memref<8x2x128xf32, #tpu.memory_space<vmem>>, vector<1x2x128xf32>
    %152 = vector.shape_cast %151 : vector<1x2x128xf32> to vector<2x128xf32>
    %153 = arith.addf %149, %152 : vector<2x128xf32>
    %154 = vector.extract_strided_slice %153 {offsets = [0, 0], sizes = [2, 32], strides = [1, 1]} : vector<2x128xf32> to vector<2x32xf32>
    %155 = arith.negf %154 : vector<2x32xf32>
    %156 = math.exp %155 : vector<2x32xf32>
    %cst_43 = arith.constant 1.000000e+00 : f32
    %157 = vector.broadcast %cst_43 : f32 to vector<2x32xf32>
    %158 = arith.addf %157, %156 : vector<2x32xf32>
    %159 = arith.divf %157, %158 : vector<2x32xf32>
    %160 = vector.extract_strided_slice %153 {offsets = [0, 32], sizes = [2, 32], strides = [1, 1]} : vector<2x128xf32> to vector<2x32xf32>
    %161 = arith.negf %160 : vector<2x32xf32>
    %162 = math.exp %161 : vector<2x32xf32>
    %cst_44 = arith.constant 1.000000e+00 : f32
    %163 = vector.broadcast %cst_44 : f32 to vector<2x32xf32>
    %164 = arith.addf %163, %162 : vector<2x32xf32>
    %165 = arith.divf %163, %164 : vector<2x32xf32>
    %166 = vector.extract_strided_slice %153 {offsets = [0, 64], sizes = [2, 32], strides = [1, 1]} : vector<2x128xf32> to vector<2x32xf32>
    %167 = math.tanh %166 : vector<2x32xf32>
    %168 = vector.extract_strided_slice %153 {offsets = [0, 96], sizes = [2, 32], strides = [1, 1]} : vector<2x128xf32> to vector<2x32xf32>
    %169 = arith.negf %168 : vector<2x32xf32>
    %170 = math.exp %169 : vector<2x32xf32>
    %cst_45 = arith.constant 1.000000e+00 : f32
    %171 = vector.broadcast %cst_45 : f32 to vector<2x32xf32>
    %172 = arith.addf %171, %170 : vector<2x32xf32>
    %173 = arith.divf %171, %172 : vector<2x32xf32>
    %174 = arith.mulf %159, %141 : vector<2x32xf32>
    %175 = arith.mulf %165, %167 : vector<2x32xf32>
    %176 = arith.addf %174, %175 : vector<2x32xf32>
    %177 = math.tanh %176 : vector<2x32xf32>
    %178 = arith.mulf %173, %177 : vector<2x32xf32>
    %179 = arith.index_cast %c4_i32 : i32 to index
    %c0_46 = arith.constant 0 : index
    %c0_47 = arith.constant 0 : index
    %180 = vector.load %arg4[%179, %c0_46, %c0_47] : memref<8x2x32xf32, #tpu.memory_space<vmem>>, vector<1x2x32xf32>
    %181 = vector.shape_cast %180 : vector<1x2x32xf32> to vector<2x32xf32>
    %182 = vector.shape_cast %178 : vector<2x32xf32> to vector<1x2x32xf32>
    tpu.vector_store %arg4[%179, %c0_46, %c0_47], %182 {strides = array<i32>} : memref<8x2x32xf32, #tpu.memory_space<vmem>>, vector<1x2x32xf32>,
    %183 = arith.maximumf %148, %178 : vector<2x32xf32>
    %c5_i32 = arith.constant 5 : i32
    %cst_48 = arith.constant dense<0.000000e+00> : vector<2x128xf32>
    %184 = tpu.matmul %183, %3, %cst_48 {dimension_numbers = #tpu.dot_dimension_numbers<[1], [0], [0], [1], [0, 0, 1, 1], [], []>} : vector<2x32xf32>, vector<32x128xf32>, vector<2x128xf32> -> vector<2x128xf32>
    %185 = arith.index_cast %c5_i32 : i32 to index
    %c0_49 = arith.constant 0 : index
    %c0_50 = arith.constant 0 : index
    %186 = vector.load %arg2[%185, %c0_49, %c0_50] : memref<8x2x128xf32, #tpu.memory_space<vmem>>, vector<1x2x128xf32>
    %187 = vector.shape_cast %186 : vector<1x2x128xf32> to vector<2x128xf32>
    %188 = arith.addf %184, %187 : vector<2x128xf32>
    %189 = vector.extract_strided_slice %188 {offsets = [0, 0], sizes = [2, 32], strides = [1, 1]} : vector<2x128xf32> to vector<2x32xf32>
    %190 = arith.negf %189 : vector<2x32xf32>
    %191 = math.exp %190 : vector<2x32xf32>
    %cst_51 = arith.constant 1.000000e+00 : f32
    %192 = vector.broadcast %cst_51 : f32 to vector<2x32xf32>
    %193 = arith.addf %192, %191 : vector<2x32xf32>
    %194 = arith.divf %192, %193 : vector<2x32xf32>
    %195 = vector.extract_strided_slice %188 {offsets = [0, 32], sizes = [2, 32], strides = [1, 1]} : vector<2x128xf32> to vector<2x32xf32>
    %196 = arith.negf %195 : vector<2x32xf32>
    %197 = math.exp %196 : vector<2x32xf32>
    %cst_52 = arith.constant 1.000000e+00 : f32
    %198 = vector.broadcast %cst_52 : f32 to vector<2x32xf32>
    %199 = arith.addf %198, %197 : vector<2x32xf32>
    %200 = arith.divf %198, %199 : vector<2x32xf32>
    %201 = vector.extract_strided_slice %188 {offsets = [0, 64], sizes = [2, 32], strides = [1, 1]} : vector<2x128xf32> to vector<2x32xf32>
    %202 = math.tanh %201 : vector<2x32xf32>
    %203 = vector.extract_strided_slice %188 {offsets = [0, 96], sizes = [2, 32], strides = [1, 1]} : vector<2x128xf32> to vector<2x32xf32>
    %204 = arith.negf %203 : vector<2x32xf32>
    %205 = math.exp %204 : vector<2x32xf32>
    %cst_53 = arith.constant 1.000000e+00 : f32
    %206 = vector.broadcast %cst_53 : f32 to vector<2x32xf32>
    %207 = arith.addf %206, %205 : vector<2x32xf32>
    %208 = arith.divf %206, %207 : vector<2x32xf32>
    %209 = arith.mulf %194, %176 : vector<2x32xf32>
    %210 = arith.mulf %200, %202 : vector<2x32xf32>
    %211 = arith.addf %209, %210 : vector<2x32xf32>
    %212 = math.tanh %211 : vector<2x32xf32>
    %213 = arith.mulf %208, %212 : vector<2x32xf32>
    %214 = arith.index_cast %c5_i32 : i32 to index
    %c0_54 = arith.constant 0 : index
    %c0_55 = arith.constant 0 : index
    %215 = vector.load %arg4[%214, %c0_54, %c0_55] : memref<8x2x32xf32, #tpu.memory_space<vmem>>, vector<1x2x32xf32>
    %216 = vector.shape_cast %215 : vector<1x2x32xf32> to vector<2x32xf32>
    %217 = vector.shape_cast %213 : vector<2x32xf32> to vector<1x2x32xf32>
    tpu.vector_store %arg4[%214, %c0_54, %c0_55], %217 {strides = array<i32>} : memref<8x2x32xf32, #tpu.memory_space<vmem>>, vector<1x2x32xf32>,
    %218 = arith.maximumf %183, %213 : vector<2x32xf32>
    %c6_i32 = arith.constant 6 : i32
    %cst_56 = arith.constant dense<0.000000e+00> : vector<2x128xf32>
    %219 = tpu.matmul %218, %3, %cst_56 {dimension_numbers = #tpu.dot_dimension_numbers<[1], [0], [0], [1], [0, 0, 1, 1], [], []>} : vector<2x32xf32>, vector<32x128xf32>, vector<2x128xf32> -> vector<2x128xf32>
    %220 = arith.index_cast %c6_i32 : i32 to index
    %c0_57 = arith.constant 0 : index
    %c0_58 = arith.constant 0 : index
    %221 = vector.load %arg2[%220, %c0_57, %c0_58] : memref<8x2x128xf32, #tpu.memory_space<vmem>>, vector<1x2x128xf32>
    %222 = vector.shape_cast %221 : vector<1x2x128xf32> to vector<2x128xf32>
    %223 = arith.addf %219, %222 : vector<2x128xf32>
    %224 = vector.extract_strided_slice %223 {offsets = [0, 0], sizes = [2, 32], strides = [1, 1]} : vector<2x128xf32> to vector<2x32xf32>
    %225 = arith.negf %224 : vector<2x32xf32>
    %226 = math.exp %225 : vector<2x32xf32>
    %cst_59 = arith.constant 1.000000e+00 : f32
    %227 = vector.broadcast %cst_59 : f32 to vector<2x32xf32>
    %228 = arith.addf %227, %226 : vector<2x32xf32>
    %229 = arith.divf %227, %228 : vector<2x32xf32>
    %230 = vector.extract_strided_slice %223 {offsets = [0, 32], sizes = [2, 32], strides = [1, 1]} : vector<2x128xf32> to vector<2x32xf32>
    %231 = arith.negf %230 : vector<2x32xf32>
    %232 = math.exp %231 : vector<2x32xf32>
    %cst_60 = arith.constant 1.000000e+00 : f32
    %233 = vector.broadcast %cst_60 : f32 to vector<2x32xf32>
    %234 = arith.addf %233, %232 : vector<2x32xf32>
    %235 = arith.divf %233, %234 : vector<2x32xf32>
    %236 = vector.extract_strided_slice %223 {offsets = [0, 64], sizes = [2, 32], strides = [1, 1]} : vector<2x128xf32> to vector<2x32xf32>
    %237 = math.tanh %236 : vector<2x32xf32>
    %238 = vector.extract_strided_slice %223 {offsets = [0, 96], sizes = [2, 32], strides = [1, 1]} : vector<2x128xf32> to vector<2x32xf32>
    %239 = arith.negf %238 : vector<2x32xf32>
    %240 = math.exp %239 : vector<2x32xf32>
    %cst_61 = arith.constant 1.000000e+00 : f32
    %241 = vector.broadcast %cst_61 : f32 to vector<2x32xf32>
    %242 = arith.addf %241, %240 : vector<2x32xf32>
    %243 = arith.divf %241, %242 : vector<2x32xf32>
    %244 = arith.mulf %229, %211 : vector<2x32xf32>
    %245 = arith.mulf %235, %237 : vector<2x32xf32>
    %246 = arith.addf %244, %245 : vector<2x32xf32>
    %247 = math.tanh %246 : vector<2x32xf32>
    %248 = arith.mulf %243, %247 : vector<2x32xf32>
    %249 = arith.index_cast %c6_i32 : i32 to index
    %c0_62 = arith.constant 0 : index
    %c0_63 = arith.constant 0 : index
    %250 = vector.load %arg4[%249, %c0_62, %c0_63] : memref<8x2x32xf32, #tpu.memory_space<vmem>>, vector<1x2x32xf32>
    %251 = vector.shape_cast %250 : vector<1x2x32xf32> to vector<2x32xf32>
    %252 = vector.shape_cast %248 : vector<2x32xf32> to vector<1x2x32xf32>
    tpu.vector_store %arg4[%249, %c0_62, %c0_63], %252 {strides = array<i32>} : memref<8x2x32xf32, #tpu.memory_space<vmem>>, vector<1x2x32xf32>,
    %253 = arith.maximumf %218, %248 : vector<2x32xf32>
    %c7_i32 = arith.constant 7 : i32
    %cst_64 = arith.constant dense<0.000000e+00> : vector<2x128xf32>
    %254 = tpu.matmul %253, %3, %cst_64 {dimension_numbers = #tpu.dot_dimension_numbers<[1], [0], [0], [1], [0, 0, 1, 1], [], []>} : vector<2x32xf32>, vector<32x128xf32>, vector<2x128xf32> -> vector<2x128xf32>
    %255 = arith.index_cast %c7_i32 : i32 to index
    %c0_65 = arith.constant 0 : index
    %c0_66 = arith.constant 0 : index
    %256 = vector.load %arg2[%255, %c0_65, %c0_66] : memref<8x2x128xf32, #tpu.memory_space<vmem>>, vector<1x2x128xf32>
    %257 = vector.shape_cast %256 : vector<1x2x128xf32> to vector<2x128xf32>
    %258 = arith.addf %254, %257 : vector<2x128xf32>
    %259 = vector.extract_strided_slice %258 {offsets = [0, 0], sizes = [2, 32], strides = [1, 1]} : vector<2x128xf32> to vector<2x32xf32>
    %260 = arith.negf %259 : vector<2x32xf32>
    %261 = math.exp %260 : vector<2x32xf32>
    %cst_67 = arith.constant 1.000000e+00 : f32
    %262 = vector.broadcast %cst_67 : f32 to vector<2x32xf32>
    %263 = arith.addf %262, %261 : vector<2x32xf32>
    %264 = arith.divf %262, %263 : vector<2x32xf32>
    %265 = vector.extract_strided_slice %258 {offsets = [0, 32], sizes = [2, 32], strides = [1, 1]} : vector<2x128xf32> to vector<2x32xf32>
    %266 = arith.negf %265 : vector<2x32xf32>
    %267 = math.exp %266 : vector<2x32xf32>
    %cst_68 = arith.constant 1.000000e+00 : f32
    %268 = vector.broadcast %cst_68 : f32 to vector<2x32xf32>
    %269 = arith.addf %268, %267 : vector<2x32xf32>
    %270 = arith.divf %268, %269 : vector<2x32xf32>
    %271 = vector.extract_strided_slice %258 {offsets = [0, 64], sizes = [2, 32], strides = [1, 1]} : vector<2x128xf32> to vector<2x32xf32>
    %272 = math.tanh %271 : vector<2x32xf32>
    %273 = vector.extract_strided_slice %258 {offsets = [0, 96], sizes = [2, 32], strides = [1, 1]} : vector<2x128xf32> to vector<2x32xf32>
    %274 = arith.negf %273 : vector<2x32xf32>
    %275 = math.exp %274 : vector<2x32xf32>
    %cst_69 = arith.constant 1.000000e+00 : f32
    %276 = vector.broadcast %cst_69 : f32 to vector<2x32xf32>
    %277 = arith.addf %276, %275 : vector<2x32xf32>
    %278 = arith.divf %276, %277 : vector<2x32xf32>
    %279 = arith.mulf %264, %246 : vector<2x32xf32>
    %280 = arith.mulf %270, %272 : vector<2x32xf32>
    %281 = arith.addf %279, %280 : vector<2x32xf32>
    %282 = math.tanh %281 : vector<2x32xf32>
    %283 = arith.mulf %278, %282 : vector<2x32xf32>
    %284 = arith.index_cast %c7_i32 : i32 to index
    %c0_70 = arith.constant 0 : index
    %c0_71 = arith.constant 0 : index
    %285 = vector.load %arg4[%284, %c0_70, %c0_71] : memref<8x2x32xf32, #tpu.memory_space<vmem>>, vector<1x2x32xf32>
    %286 = vector.shape_cast %285 : vector<1x2x32xf32> to vector<2x32xf32>
    %287 = vector.shape_cast %283 : vector<2x32xf32> to vector<1x2x32xf32>
    tpu.vector_store %arg4[%284, %c0_70, %c0_71], %287 {strides = array<i32>} : memref<8x2x32xf32, #tpu.memory_space<vmem>>, vector<1x2x32xf32>,
    %288 = arith.maximumf %253, %283 : vector<2x32xf32>
    %c8_i32 = arith.constant 8 : i32
    %c0_72 = arith.constant 0 : index
    %c0_73 = arith.constant 0 : index
    %289 = vector.load %arg5[%c0_72, %c0_73] : memref<2x32xf32, #tpu.memory_space<vmem>>, vector<2x32xf32>
    tpu.vector_store %arg5[%c0_72, %c0_73], %288 {strides = array<i32>} : memref<2x32xf32, #tpu.memory_space<vmem>>, vector<2x32xf32>,
    %c0_74 = arith.constant 0 : index
    %c0_75 = arith.constant 0 : index
    %290 = vector.load %arg6[%c0_74, %c0_75] : memref<2x32xf32, #tpu.memory_space<vmem>>, vector<2x32xf32>
    tpu.vector_store %arg6[%c0_74, %c0_75], %281 {strides = array<i32>} : memref<2x32xf32, #tpu.memory_space<vmem>>, vector<2x32xf32>,
    return
  }
  func.func @transform_0(%arg0: i32, %arg1: i32) -> (i32, i32, i32) {
    %c0_i32 = arith.constant 0 : i32
    %c0_i32_0 = arith.constant 0 : i32
    return %arg1, %arg0, %c0_i32 : i32, i32, i32
  }
  func.func @transform_1(%arg0: i32, %arg1: i32) -> (i32, i32) {
    %c0_i32 = arith.constant 0 : i32
    %c0_i32_0 = arith.constant 0 : i32
    %c0_i32_1 = arith.constant 0 : i32
    return %c0_i32, %c0_i32_0 : i32, i32
  }
  func.func @transform_2(%arg0: i32, %arg1: i32) -> (i32, i32, i32) {
    %c0_i32 = arith.constant 0 : i32
    %c0_i32_0 = arith.constant 0 : i32
    return %arg1, %arg0, %c0_i32 : i32, i32, i32
  }
  func.func @transform_3(%arg0: i32, %arg1: i32) -> (i32, i32) {
    %c0_i32 = arith.constant 0 : i32
    %c0_i32_0 = arith.constant 0 : i32
    return %arg0, %c0_i32 : i32, i32
  }
  func.func @transform_4(%arg0: i32, %arg1: i32) -> (i32, i32) {
    %c0_i32 = arith.constant 0 : i32
    %c0_i32_0 = arith.constant 0 : i32
    return %arg0, %c0_i32 : i32, i32
  }
}

</mosaic_0001>

<llo_original>
// kernel: tpu_custom_call.1
$region0: #{tpu_custom_call.1}
  #allocation0 [shape = 'u32[]', space=smem, size = 0x4, offset = 0x4, fixed_abs, tag = 'smem constant byte address 0x4 - core index']
  #allocation1 [shape = 'u32[144,128]{1,0:T(1,128)}', space=vmem, size = 0x12000, scoped, tag = 'internal scratch']
  %s0 = inlined_call_operand.hbm [shape: f32[8,2,128], index: 0, kind: input, shape index: {}]
  %s1 = inlined_call_operand.hbm [shape: f32[32,128], index: 1, kind: input, shape index: {}]
  %s2 = inlined_call_operand.hbm [shape: f32[8,2,32], index: 2, kind: output, shape index: {0}]
  %s3 = inlined_call_operand.hbm [shape: f32[2,32], index: 3, kind: output, shape index: {1}]
  %s4 = inlined_call_operand.hbm [shape: f32[2,32], index: 4, kind: output, shape index: {2}]
  %5 = xla_tuple %s2, %s3, %s4
  %s6 = sld [smem:[#allocation0]]
  $region46: #{tpu_custom_call.1} parent=0
    _
  %s8 = ssub.s32 1, %s6
  %s9 = scalar_select 0, %s8, %s6
  $region1: #{tpu_custom_call.1} parent=0
    #allocation2 [shape = 'u8[8192]{0}', space=vmem, size = 0x2000, scoped, tag = 'input window, operand 0, single buffered']
    #allocation3 [shape = 's32[1]{0}', space=sflag, size = 0x4, scoped, tag = 'scoped memory for tpu_custom_call.1']
    #allocation4 [shape = 's32[1]{0}', space=sflag, size = 0x4, scoped, tag = 'scoped memory for tpu_custom_call.1']
    #allocation5 [shape = 'u8[16384]{0}', space=vmem, size = 0x4000, scoped, tag = 'input window, operand 1, single buffered']
    #allocation6 [shape = 's32[1]{0}', space=sflag, size = 0x4, scoped, tag = 'scoped memory for tpu_custom_call.1']
    #allocation7 [shape = 'u8[8192]{0}', space=vmem, size = 0x2000, scoped, tag = 'output window, operand 0, single buffered']
    #allocation8 [shape = 'u8[1024]{0}', space=vmem, size = 0x400, scoped, tag = 'output window, operand 1, single buffered']
    #allocation9 [shape = 's32[1]{0}', space=sflag, size = 0x4, scoped, tag = 'scoped memory for tpu_custom_call.1']
    #allocation10 [shape = 'u8[1024]{0}', space=vmem, size = 0x400, scoped, tag = 'output window, operand 2, single buffered']
    %10 = vsyncpa [#allocation3], 0
    %11 = vsyncpa [#allocation6], 0
    %12 = vsyncpa [#allocation4], 0
    %13 = vsyncpa [#allocation9], 0
    // Predicated region
    $region2: #{tpu_custom_call.1} parent=1 // pred_check
      _
    $region3: #{tpu_custom_call.1} parent=1 // pred_check_branch
      %15 = sbr.rel (0) target = $region5
    $region4: #{tpu_custom_call.1} parent=1 // pred_region
      %s17 = ssub.s32 256, 256
      %18 = vsyncadd [#allocation3], %s17
      %s19 = sshll.u32 [#allocation2], 4
      %s20 = int_to_ptr.vmem [resolvable:$true] %s19
      %25 = dma.hbm_to_vmem [thread:$0]  %s0, 256, %s20, [#allocation3], 32, 32, 2
    $region5: #{tpu_custom_call.1} parent=1 // pred_fallthru
      _
    // Predicated region
    $region6: #{tpu_custom_call.1} parent=1 // pred_check
      _
    $region7: #{tpu_custom_call.1} parent=1 // pred_check_branch
      %27 = sbr.rel (0) target = $region9
    $region8: #{tpu_custom_call.1} parent=1 // pred_region
      %s29 = ssub.s32 512, 512
      %30 = vsyncadd [#allocation6], %s29
      %s31 = sshll.u32 [#allocation5], 4
      %s32 = int_to_ptr.vmem [resolvable:$true] %s31
      %37 = dma.hbm_to_vmem [thread:$0]  %s1, 512, %s32, [#allocation6], 128, 128, 8
    $region9: #{tpu_custom_call.1} parent=1 // pred_fallthru
      _
    // Predicated region
    $region10: #{tpu_custom_call.1} parent=1 // pred_check
      _
    $region11: #{tpu_custom_call.1} parent=1 // pred_check_branch
      %39 = sbr.rel (0) target = $region13
    $region12: #{tpu_custom_call.1} parent=1 // pred_region
      %40 = dma.done [#allocation3], 256
    $region13: #{tpu_custom_call.1} parent=1 // pred_fallthru
      _
    // Predicated region
    $region14: #{tpu_custom_call.1} parent=1 // pred_check
      _
    $region15: #{tpu_custom_call.1} parent=1 // pred_check_branch
      %42 = sbr.rel (0) target = $region17
    $region16: #{tpu_custom_call.1} parent=1 // pred_region
      %43 = dma.done [#allocation6], 512
    $region17: #{tpu_custom_call.1} parent=1 // pred_fallthru
      _
    %p44 = scmp.eq.s32.totalorder 0, 0
    // Predicated region
    $region18: #{tpu_custom_call.1} parent=1 // pred_check
      %p45 = pneg %p44
    $region19: #{tpu_custom_call.1} parent=1 // pred_check_branch
      %47 = sbr.rel (%p45) target = $region21
    $region20: #{tpu_custom_call.1} parent=1 // pred_region
      %vm48 = vcmask 254976
      %49 = vst.msk [vmem:[#allocation8] sm:$0x3] %vm48, 0.0
      %50 = vst.msk [vmem:[#allocation10] sm:$0x3] %vm48, 0.0
    $region21: #{tpu_custom_call.1} parent=1 // pred_fallthru
      _
    %v51 = vld [vmem:[#allocation5] sm:$0xff]
    %v52 = vld [vmem:[#allocation5 + $0x8] sm:$0xff]
    %v53 = vld [vmem:[#allocation5 + $0x10] sm:$0xff]
    %v54 = vld [vmem:[#allocation5 + $0x18] sm:$0xff]
    %v55 = vld [vmem:[#allocation8] sm:$0x3]
    %v56 = vld [vmem:[#allocation10] sm:$0x3]
    %s57 = scalar_select %p44, 1, 0
    %v58 = vstv %s57
    %vm59 = vcmp.eq.s32.totalorder %v58, 1
    %v60 = vsel %vm59, -inf, %v55
    %v61 = vld [vmem:[#allocation2] sm:$0x3]
    %vm62 = vcmask 261120
    %v64 = vsel %vm62, %v55, 0
    %66 = vmatprep.subr.mxu0 0.0
    %67 = vmatpush1.msra.mxu0 %v51
    %68 = vmatprep.subr.mxu0 0.0
    %69 = vmatpush1.msra.mxu0 %v52
    %70 = vmatprep.subr.mxu0 0.0
    %71 = vmatpush1.msra.mxu0 %v53
    %72 = vmatprep.subr.mxu0 0.0
    %73 = vmatpush1.msra.mxu0 %v54
    %74 = vmatprep.subr.mxu0 0.0
    %75 = vmatpush1.msra.mxu0 0.0
    %76 = vmatprep.subr.mxu0 0.0
    %77 = vmatpush1.msra.mxu0 0.0
    %78 = vmatprep.subr.mxu0 0.0
    %79 = vmatpush1.msra.mxu0 0.0
    %80 = vmatprep.subr.mxu0 0.0
    %81 = vmatpush1.msra.mxu0 0.0
    %82 = vmatprep.subr.mxu0 0.0
    %83 = vmatpush1.msra.mxu0 0.0
    %84 = vmatprep.subr.mxu0 0.0
    %85 = vmatpush1.msra.mxu0 0.0
    %86 = vmatprep.subr.mxu0 0.0
    %87 = vmatpush1.msra.mxu0 0.0
    %88 = vmatprep.subr.mxu0 0.0
    %89 = vmatpush1.msra.mxu0 0.0
    %90 = vmatprep.subr.mxu0 0.0
    %91 = vmatpush1.msra.mxu0 0.0
    %92 = vmatprep.subr.mxu0 0.0
    %93 = vmatpush1.msra.mxu0 0.0
    %94 = vmatprep.subr.mxu0 0.0
    %95 = vmatpush1.msra.mxu0 0.0
    %96 = vmatprep.subr.mxu0 0.0
    %97 = vmatpush1.msra.mxu0 0.0
    %98 = vmatprep.subr.mxu0 0.0
    %99 = vmatpush1.msra.mxu0 0.0
    %100 = vmatprep.subr.mxu0 0.0
    %101 = vmatpush1.msra.mxu0 0.0
    %102 = vmatprep.subr.mxu0 0.0
    %103 = vmatpush1.msra.mxu0 0.0
    %104 = vmatprep.subr.mxu0 0.0
    %105 = vmatpush1.msra.mxu0 0.0
    %106 = vmatprep.subr.mxu0 0.0
    %107 = vmatpush1.msra.mxu0 0.0
    %108 = vmatprep.subr.mxu0 0.0
    %109 = vmatpush1.msra.mxu0 0.0
    %110 = vmatprep.subr.mxu0 0.0
    %111 = vmatpush1.msra.mxu0 0.0
    %112 = vmatprep.subr.mxu0 0.0
    %113 = vmatpush1.msra.mxu0 0.0
    %114 = vmatprep.subr.mxu0 0.0
    %115 = vmatpush1.msra.mxu0 0.0
    %116 = vmatprep.subr.mxu0 0.0
    %117 = vmatpush1.msra.mxu0 0.0
    %118 = vmatprep.subr.mxu0 0.0
    %119 = vmatpush1.msra.mxu0 0.0
    %120 = vmatprep.subr.mxu0 0.0
    %121 = vmatpush1.msra.mxu0 0.0
    %122 = vmatprep.subr.mxu0 0.0
    %123 = vmatpush1.msra.mxu0 0.0
    %124 = vmatprep.subr.mxu0 0.0
    %125 = vmatpush1.msra.mxu0 0.0
    %126 = vmatprep.subr.mxu0 0.0
    %127 = vmatpush1.msra.mxu0 0.0
    %128 = vmatprep.subr.mxu0 0.0
    %129 = vmatpush1.msra.mxu0 0.0
    %130 = vmatprep.mubr.f32.mxu0 0.0
    %131 = vmatmul.mubr.f32.gmra.mrb[0].mxu0 %v64
    %v132 = vpop.f32.mrb[0].mxu0
    %v133 = vadd.f32 %v61, %v132
    %v134 = vpop.f32.mrb[0].mxu0
    %135 = vdwg.mxu0
    %v136 = vxor.u32 %v133, 2147483648
    %v137 = vmul.f32 %v136, 1.442695
    %v138 = vpow.pop %v137
    %v139 = vadd.f32 %v138, 1.0
    %v140 = vrcp.pop %v139
    %v141 = vmul.f32 1.0, %v140
    %v142 = vtanh.pop %v133
    %v143 = vmul.f32 %v141, %v56
    %145 = vrot.lane.b32.xlu0 %v142, 96
    %v146 = vpop.permute.xlu0 %145
    %v148 = vmul.f32 %v141, %v146
    %150 = vrot.lane.b32.xlu0 %v148, 96
    %v151 = vpop.permute.xlu0 %150
    %v153 = vadd.f32 %v143, %v151
    %v154 = vtanh.pop %v153
    %156 = vrot.lane.b32.xlu0 %v154, 96
    %v157 = vpop.permute.xlu0 %156
    %v159 = vmul.f32 %v141, %v157
    %161 = vrot.lane.b32.xlu0 %v159, 32
    %v162 = vpop.permute.xlu0 %161
    %vm164 = vcmask 254976
    %165 = vst.msk [vmem:[#allocation7] sm:$0x3] %vm164, %v162
    %v166 = vmax.f32 %v60, %v162
    %s167 = scalar_lea.vmem [#allocation2], 2
    %v168 = vld [vmem:[%s167] sm:$0x3]
    %v170 = vsel %vm62, %v166, 0
    %172 = vmatprep.subr.mxu0 0.0
    %173 = vmatpush1.msra.mxu0 %v51
    %174 = vmatprep.subr.mxu0 0.0
    %175 = vmatpush1.msra.mxu0 %v52
    %176 = vmatprep.subr.mxu0 0.0
    %177 = vmatpush1.msra.mxu0 %v53
    %178 = vmatprep.subr.mxu0 0.0
    %179 = vmatpush1.msra.mxu0 %v54
    %180 = vmatprep.subr.mxu0 0.0
    %181 = vmatpush1.msra.mxu0 0.0
    %182 = vmatprep.subr.mxu0 0.0
    %183 = vmatpush1.msra.mxu0 0.0
    %184 = vmatprep.subr.mxu0 0.0
    %185 = vmatpush1.msra.mxu0 0.0
    %186 = vmatprep.subr.mxu0 0.0
    %187 = vmatpush1.msra.mxu0 0.0
    %188 = vmatprep.subr.mxu0 0.0
    %189 = vmatpush1.msra.mxu0 0.0
    %190 = vmatprep.subr.mxu0 0.0
    %191 = vmatpush1.msra.mxu0 0.0
    %192 = vmatprep.subr.mxu0 0.0
    %193 = vmatpush1.msra.mxu0 0.0
    %194 = vmatprep.subr.mxu0 0.0
    %195 = vmatpush1.msra.mxu0 0.0
    %196 = vmatprep.subr.mxu0 0.0
    %197 = vmatpush1.msra.mxu0 0.0
    %198 = vmatprep.subr.mxu0 0.0
    %199 = vmatpush1.msra.mxu0 0.0
    %200 = vmatprep.subr.mxu0 0.0
    %201 = vmatpush1.msra.mxu0 0.0
    %202 = vmatprep.subr.mxu0 0.0
    %203 = vmatpush1.msra.mxu0 0.0
    %204 = vmatprep.subr.mxu0 0.0
    %205 = vmatpush1.msra.mxu0 0.0
    %206 = vmatprep.subr.mxu0 0.0
    %207 = vmatpush1.msra.mxu0 0.0
    %208 = vmatprep.subr.mxu0 0.0
    %209 = vmatpush1.msra.mxu0 0.0
    %210 = vmatprep.subr.mxu0 0.0
    %211 = vmatpush1.msra.mxu0 0.0
    %212 = vmatprep.subr.mxu0 0.0
    %213 = vmatpush1.msra.mxu0 0.0
    %214 = vmatprep.subr.mxu0 0.0
    %215 = vmatpush1.msra.mxu0 0.0
    %216 = vmatprep.subr.mxu0 0.0
    %217 = vmatpush1.msra.mxu0 0.0
    %218 = vmatprep.subr.mxu0 0.0
    %219 = vmatpush1.msra.mxu0 0.0
    %220 = vmatprep.subr.mxu0 0.0
    %221 = vmatpush1.msra.mxu0 0.0
    %222 = vmatprep.subr.mxu0 0.0
    %223 = vmatpush1.msra.mxu0 0.0
    %224 = vmatprep.subr.mxu0 0.0
    %225 = vmatpush1.msra.mxu0 0.0
    %226 = vmatprep.subr.mxu0 0.0
    %227 = vmatpush1.msra.mxu0 0.0
    %228 = vmatprep.subr.mxu0 0.0
    %229 = vmatpush1.msra.mxu0 0.0
    %230 = vmatprep.subr.mxu0 0.0
    %231 = vmatpush1.msra.mxu0 0.0
    %232 = vmatprep.subr.mxu0 0.0
    %233 = vmatpush1.msra.mxu0 0.0
    %234 = vmatprep.subr.mxu0 0.0
    %235 = vmatpush1.msra.mxu0 0.0
    %236 = vmatprep.mubr.f32.mxu0 0.0
    %237 = vmatmul.mubr.f32.gmra.mrb[0].mxu0 %v170
    %v238 = vpop.f32.mrb[0].mxu0
    %v239 = vadd.f32 %v168, %v238
    %v240 = vpop.f32.mrb[0].mxu0
    %241 = vdwg.mxu0
    %v242 = vxor.u32 %v239, 2147483648
    %v243 = vmul.f32 %v242, 1.442695
    %v244 = vpow.pop %v243
    %v245 = vadd.f32 %v244, 1.0
    %v246 = vrcp.pop %v245
    %v247 = vmul.f32 1.0, %v246
    %v248 = vtanh.pop %v239
    %v249 = vmul.f32 %v247, %v153
    %251 = vrot.lane.b32.xlu0 %v248, 96
    %v252 = vpop.permute.xlu0 %251
    %v254 = vmul.f32 %v247, %v252
    %256 = vrot.lane.b32.xlu0 %v254, 96
    %v257 = vpop.permute.xlu0 %256
    %v259 = vadd.f32 %v249, %v257
    %v260 = vtanh.pop %v259
    %262 = vrot.lane.b32.xlu0 %v260, 96
    %v263 = vpop.permute.xlu0 %262
    %v265 = vmul.f32 %v247, %v263
    %267 = vrot.lane.b32.xlu0 %v265, 32
    %v268 = vpop.permute.xlu0 %267
    %s270 = scalar_lea.vmem [#allocation7], 2
    %271 = vst.msk [vmem:[%s270] sm:$0x3] %vm164, %v268
    %v272 = vmax.f32 %v166, %v268
    %s273 = scalar_lea.vmem [#allocation2], 4
    %v274 = vld [vmem:[%s273] sm:$0x3]
    %v276 = vsel %vm62, %v272, 0
    %278 = vmatprep.subr.mxu0 0.0
    %279 = vmatpush1.msra.mxu0 %v51
    %280 = vmatprep.subr.mxu0 0.0
    %281 = vmatpush1.msra.mxu0 %v52
    %282 = vmatprep.subr.mxu0 0.0
    %283 = vmatpush1.msra.mxu0 %v53
    %284 = vmatprep.subr.mxu0 0.0
    %285 = vmatpush1.msra.mxu0 %v54
    %286 = vmatprep.subr.mxu0 0.0
    %287 = vmatpush1.msra.mxu0 0.0
    %288 = vmatprep.subr.mxu0 0.0
    %289 = vmatpush1.msra.mxu0 0.0
    %290 = vmatprep.subr.mxu0 0.0
    %291 = vmatpush1.msra.mxu0 0.0
    %292 = vmatprep.subr.mxu0 0.0
    %293 = vmatpush1.msra.mxu0 0.0
    %294 = vmatprep.subr.mxu0 0.0
    %295 = vmatpush1.msra.mxu0 0.0
    %296 = vmatprep.subr.mxu0 0.0
    %297 = vmatpush1.msra.mxu0 0.0
    %298 = vmatprep.subr.mxu0 0.0
    %299 = vmatpush1.msra.mxu0 0.0
    %300 = vmatprep.subr.mxu0 0.0
    %301 = vmatpush1.msra.mxu0 0.0
    %302 = vmatprep.subr.mxu0 0.0
    %303 = vmatpush1.msra.mxu0 0.0
    %304 = vmatprep.subr.mxu0 0.0
    %305 = vmatpush1.msra.mxu0 0.0
    %306 = vmatprep.subr.mxu0 0.0
    %307 = vmatpush1.msra.mxu0 0.0
    %308 = vmatprep.subr.mxu0 0.0
    %309 = vmatpush1.msra.mxu0 0.0
    %310 = vmatprep.subr.mxu0 0.0
    %311 = vmatpush1.msra.mxu0 0.0
    %312 = vmatprep.subr.mxu0 0.0
    %313 = vmatpush1.msra.mxu0 0.0
    %314 = vmatprep.subr.mxu0 0.0
    %315 = vmatpush1.msra.mxu0 0.0
    %316 = vmatprep.subr.mxu0 0.0
    %317 = vmatpush1.msra.mxu0 0.0
    %318 = vmatprep.subr.mxu0 0.0
    %319 = vmatpush1.msra.mxu0 0.0
    %320 = vmatprep.subr.mxu0 0.0
    %321 = vmatpush1.msra.mxu0 0.0
    %322 = vmatprep.subr.mxu0 0.0
    %323 = vmatpush1.msra.mxu0 0.0
    %324 = vmatprep.subr.mxu0 0.0
    %325 = vmatpush1.msra.mxu0 0.0
    %326 = vmatprep.subr.mxu0 0.0
    %327 = vmatpush1.msra.mxu0 0.0
    %328 = vmatprep.subr.mxu0 0.0
    %329 = vmatpush1.msra.mxu0 0.0
    %330 = vmatprep.subr.mxu0 0.0
    %331 = vmatpush1.msra.mxu0 0.0
    %332 = vmatprep.subr.mxu0 0.0
    %333 = vmatpush1.msra.mxu0 0.0
    %334 = vmatprep.subr.mxu0 0.0
    %335 = vmatpush1.msra.mxu0 0.0
    %336 = vmatprep.subr.mxu0 0.0
    %337 = vmatpush1.msra.mxu0 0.0
    %338 = vmatprep.subr.mxu0 0.0
    %339 = vmatpush1.msra.mxu0 0.0
    %340 = vmatprep.subr.mxu0 0.0
    %341 = vmatpush1.msra.mxu0 0.0
    %342 = vmatprep.mubr.f32.mxu0 0.0
    %343 = vmatmul.mubr.f32.gmra.mrb[0].mxu0 %v276
    %v344 = vpop.f32.mrb[0].mxu0
    %v345 = vadd.f32 %v274, %v344
    %v346 = vpop.f32.mrb[0].mxu0
    %347 = vdwg.mxu0
    %v348 = vxor.u32 %v345, 2147483648
    %v349 = vmul.f32 %v348, 1.442695
    %v350 = vpow.pop %v349
    %v351 = vadd.f32 %v350, 1.0
    %v352 = vrcp.pop %v351
    %v353 = vmul.f32 1.0, %v352
    %v354 = vtanh.pop %v345
    %v355 = vmul.f32 %v353, %v259
    %357 = vrot.lane.b32.xlu0 %v354, 96
    %v358 = vpop.permute.xlu0 %357
    %v360 = vmul.f32 %v353, %v358
    %362 = vrot.lane.b32.xlu0 %v360, 96
    %v363 = vpop.permute.xlu0 %362
    %v365 = vadd.f32 %v355, %v363
    %v366 = vtanh.pop %v365
    %368 = vrot.lane.b32.xlu0 %v366, 96
    %v369 = vpop.permute.xlu0 %368
    %v371 = vmul.f32 %v353, %v369
    %373 = vrot.lane.b32.xlu0 %v371, 32
    %v374 = vpop.permute.xlu0 %373
    %s376 = scalar_lea.vmem [#allocation7], 4
    %377 = vst.msk [vmem:[%s376] sm:$0x3] %vm164, %v374
    %v378 = vmax.f32 %v272, %v374
    %s379 = scalar_lea.vmem [#allocation2], 6
    %v380 = vld [vmem:[%s379] sm:$0x3]
    %v382 = vsel %vm62, %v378, 0
    %384 = vmatprep.subr.mxu0 0.0
    %385 = vmatpush1.msra.mxu0 %v51
    %386 = vmatprep.subr.mxu0 0.0
    %387 = vmatpush1.msra.mxu0 %v52
    %388 = vmatprep.subr.mxu0 0.0
    %389 = vmatpush1.msra.mxu0 %v53
    %390 = vmatprep.subr.mxu0 0.0
    %391 = vmatpush1.msra.mxu0 %v54
    %392 = vmatprep.subr.mxu0 0.0
    %393 = vmatpush1.msra.mxu0 0.0
    %394 = vmatprep.subr.mxu0 0.0
    %395 = vmatpush1.msra.mxu0 0.0
    %396 = vmatprep.subr.mxu0 0.0
    %397 = vmatpush1.msra.mxu0 0.0
    %398 = vmatprep.subr.mxu0 0.0
    %399 = vmatpush1.msra.mxu0 0.0
    %400 = vmatprep.subr.mxu0 0.0
    %401 = vmatpush1.msra.mxu0 0.0
    %402 = vmatprep.subr.mxu0 0.0
    %403 = vmatpush1.msra.mxu0 0.0
    %404 = vmatprep.subr.mxu0 0.0
    %405 = vmatpush1.msra.mxu0 0.0
    %406 = vmatprep.subr.mxu0 0.0
    %407 = vmatpush1.msra.mxu0 0.0
    %408 = vmatprep.subr.mxu0 0.0
    %409 = vmatpush1.msra.mxu0 0.0
    %410 = vmatprep.subr.mxu0 0.0
    %411 = vmatpush1.msra.mxu0 0.0
    %412 = vmatprep.subr.mxu0 0.0
    %413 = vmatpush1.msra.mxu0 0.0
    %414 = vmatprep.subr.mxu0 0.0
    %415 = vmatpush1.msra.mxu0 0.0
    %416 = vmatprep.subr.mxu0 0.0
    %417 = vmatpush1.msra.mxu0 0.0
    %418 = vmatprep.subr.mxu0 0.0
    %419 = vmatpush1.msra.mxu0 0.0
    %420 = vmatprep.subr.mxu0 0.0
    %421 = vmatpush1.msra.mxu0 0.0
    %422 = vmatprep.subr.mxu0 0.0
    %423 = vmatpush1.msra.mxu0 0.0
    %424 = vmatprep.subr.mxu0 0.0
    %425 = vmatpush1.msra.mxu0 0.0
    %426 = vmatprep.subr.mxu0 0.0
    %427 = vmatpush1.msra.mxu0 0.0
    %428 = vmatprep.subr.mxu0 0.0
    %429 = vmatpush1.msra.mxu0 0.0
    %430 = vmatprep.subr.mxu0 0.0
    %431 = vmatpush1.msra.mxu0 0.0
    %432 = vmatprep.subr.mxu0 0.0
    %433 = vmatpush1.msra.mxu0 0.0
    %434 = vmatprep.subr.mxu0 0.0
    %435 = vmatpush1.msra.mxu0 0.0
    %436 = vmatprep.subr.mxu0 0.0
    %437 = vmatpush1.msra.mxu0 0.0
    %438 = vmatprep.subr.mxu0 0.0
    %439 = vmatpush1.msra.mxu0 0.0
    %440 = vmatprep.subr.mxu0 0.0
    %441 = vmatpush1.msra.mxu0 0.0
    %442 = vmatprep.subr.mxu0 0.0
    %443 = vmatpush1.msra.mxu0 0.0
    %444 = vmatprep.subr.mxu0 0.0
    %445 = vmatpush1.msra.mxu0 0.0
    %446 = vmatprep.subr.mxu0 0.0
    %447 = vmatpush1.msra.mxu0 0.0
    %448 = vmatprep.mubr.f32.mxu0 0.0
    %449 = vmatmul.mubr.f32.gmra.mrb[0].mxu0 %v382
    %v450 = vpop.f32.mrb[0].mxu0
    %v451 = vadd.f32 %v380, %v450
    %v452 = vpop.f32.mrb[0].mxu0
    %453 = vdwg.mxu0
    %v454 = vxor.u32 %v451, 2147483648
    %v455 = vmul.f32 %v454, 1.442695
    %v456 = vpow.pop %v455
    %v457 = vadd.f32 %v456, 1.0
    %v458 = vrcp.pop %v457
    %v459 = vmul.f32 1.0, %v458
    %v460 = vtanh.pop %v451
    %v461 = vmul.f32 %v459, %v365
    %463 = vrot.lane.b32.xlu0 %v460, 96
    %v464 = vpop.permute.xlu0 %463
    %v466 = vmul.f32 %v459, %v464
    %468 = vrot.lane.b32.xlu0 %v466, 96
    %v469 = vpop.permute.xlu0 %468
    %v471 = vadd.f32 %v461, %v469
    %v472 = vtanh.pop %v471
    %474 = vrot.lane.b32.xlu0 %v472, 96
    %v475 = vpop.permute.xlu0 %474
    %v477 = vmul.f32 %v459, %v475
    %479 = vrot.lane.b32.xlu0 %v477, 32
    %v480 = vpop.permute.xlu0 %479
    %s482 = scalar_lea.vmem [#allocation7], 6
    %483 = vst.msk [vmem:[%s482] sm:$0x3] %vm164, %v480
    %v484 = vmax.f32 %v378, %v480
    %s485 = scalar_lea.vmem [#allocation2], 8
    %v486 = vld [vmem:[%s485] sm:$0x3]
    %v488 = vsel %vm62, %v484, 0
    %490 = vmatprep.subr.mxu0 0.0
    %491 = vmatpush1.msra.mxu0 %v51
    %492 = vmatprep.subr.mxu0 0.0
    %493 = vmatpush1.msra.mxu0 %v52
    %494 = vmatprep.subr.mxu0 0.0
    %495 = vmatpush1.msra.mxu0 %v53
    %496 = vmatprep.subr.mxu0 0.0
    %497 = vmatpush1.msra.mxu0 %v54
    %498 = vmatprep.subr.mxu0 0.0
    %499 = vmatpush1.msra.mxu0 0.0
    %500 = vmatprep.subr.mxu0 0.0
    %501 = vmatpush1.msra.mxu0 0.0
    %502 = vmatprep.subr.mxu0 0.0
    %503 = vmatpush1.msra.mxu0 0.0
    %504 = vmatprep.subr.mxu0 0.0
    %505 = vmatpush1.msra.mxu0 0.0
    %506 = vmatprep.subr.mxu0 0.0
    %507 = vmatpush1.msra.mxu0 0.0
    %508 = vmatprep.subr.mxu0 0.0
    %509 = vmatpush1.msra.mxu0 0.0
    %510 = vmatprep.subr.mxu0 0.0
    %511 = vmatpush1.msra.mxu0 0.0
    %512 = vmatprep.subr.mxu0 0.0
    %513 = vmatpush1.msra.mxu0 0.0
    %514 = vmatprep.subr.mxu0 0.0
    %515 = vmatpush1.msra.mxu0 0.0
    %516 = vmatprep.subr.mxu0 0.0
    %517 = vmatpush1.msra.mxu0 0.0
    %518 = vmatprep.subr.mxu0 0.0
    %519 = vmatpush1.msra.mxu0 0.0
    %520 = vmatprep.subr.mxu0 0.0
    %521 = vmatpush1.msra.mxu0 0.0
    %522 = vmatprep.subr.mxu0 0.0
    %523 = vmatpush1.msra.mxu0 0.0
    %524 = vmatprep.subr.mxu0 0.0
    %525 = vmatpush1.msra.mxu0 0.0
    %526 = vmatprep.subr.mxu0 0.0
    %527 = vmatpush1.msra.mxu0 0.0
    %528 = vmatprep.subr.mxu0 0.0
    %529 = vmatpush1.msra.mxu0 0.0
    %530 = vmatprep.subr.mxu0 0.0
    %531 = vmatpush1.msra.mxu0 0.0
    %532 = vmatprep.subr.mxu0 0.0
    %533 = vmatpush1.msra.mxu0 0.0
    %534 = vmatprep.subr.mxu0 0.0
    %535 = vmatpush1.msra.mxu0 0.0
    %536 = vmatprep.subr.mxu0 0.0
    %537 = vmatpush1.msra.mxu0 0.0
    %538 = vmatprep.subr.mxu0 0.0
    %539 = vmatpush1.msra.mxu0 0.0
    %540 = vmatprep.subr.mxu0 0.0
    %541 = vmatpush1.msra.mxu0 0.0
    %542 = vmatprep.subr.mxu0 0.0
    %543 = vmatpush1.msra.mxu0 0.0
    %544 = vmatprep.subr.mxu0 0.0
    %545 = vmatpush1.msra.mxu0 0.0
    %546 = vmatprep.subr.mxu0 0.0
    %547 = vmatpush1.msra.mxu0 0.0
    %548 = vmatprep.subr.mxu0 0.0
    %549 = vmatpush1.msra.mxu0 0.0
    %550 = vmatprep.subr.mxu0 0.0
    %551 = vmatpush1.msra.mxu0 0.0
    %552 = vmatprep.subr.mxu0 0.0
    %553 = vmatpush1.msra.mxu0 0.0
    %554 = vmatprep.mubr.f32.mxu0 0.0
    %555 = vmatmul.mubr.f32.gmra.mrb[0].mxu0 %v488
    %v556 = vpop.f32.mrb[0].mxu0
    %v557 = vadd.f32 %v486, %v556
    %v558 = vpop.f32.mrb[0].mxu0
    %559 = vdwg.mxu0
    %v560 = vxor.u32 %v557, 2147483648
    %v561 = vmul.f32 %v560, 1.442695
    %v562 = vpow.pop %v561
    %v563 = vadd.f32 %v562, 1.0
    %v564 = vrcp.pop %v563
    %v565 = vmul.f32 1.0, %v564
    %v566 = vtanh.pop %v557
    %v567 = vmul.f32 %v565, %v471
    %569 = vrot.lane.b32.xlu0 %v566, 96
    %v570 = vpop.permute.xlu0 %569
    %v572 = vmul.f32 %v565, %v570
    %574 = vrot.lane.b32.xlu0 %v572, 96
    %v575 = vpop.permute.xlu0 %574
    %v577 = vadd.f32 %v567, %v575
    %v578 = vtanh.pop %v577
    %580 = vrot.lane.b32.xlu0 %v578, 96
    %v581 = vpop.permute.xlu0 %580
    %v583 = vmul.f32 %v565, %v581
    %585 = vrot.lane.b32.xlu0 %v583, 32
    %v586 = vpop.permute.xlu0 %585
    %s588 = scalar_lea.vmem [#allocation7], 8
    %589 = vst.msk [vmem:[%s588] sm:$0x3] %vm164, %v586
    %v590 = vmax.f32 %v484, %v586
    %s591 = scalar_lea.vmem [#allocation2], 10
    %v592 = vld [vmem:[%s591] sm:$0x3]
    %v594 = vsel %vm62, %v590, 0
    %596 = vmatprep.subr.mxu0 0.0
    %597 = vmatpush1.msra.mxu0 %v51
    %598 = vmatprep.subr.mxu0 0.0
    %599 = vmatpush1.msra.mxu0 %v52
    %600 = vmatprep.subr.mxu0 0.0
    %601 = vmatpush1.msra.mxu0 %v53
    %602 = vmatprep.subr.mxu0 0.0
    %603 = vmatpush1.msra.mxu0 %v54
    %604 = vmatprep.subr.mxu0 0.0
    %605 = vmatpush1.msra.mxu0 0.0
    %606 = vmatprep.subr.mxu0 0.0
    %607 = vmatpush1.msra.mxu0 0.0
    %608 = vmatprep.subr.mxu0 0.0
    %609 = vmatpush1.msra.mxu0 0.0
    %610 = vmatprep.subr.mxu0 0.0
    %611 = vmatpush1.msra.mxu0 0.0
    %612 = vmatprep.subr.mxu0 0.0
    %613 = vmatpush1.msra.mxu0 0.0
    %614 = vmatprep.subr.mxu0 0.0
    %615 = vmatpush1.msra.mxu0 0.0
    %616 = vmatprep.subr.mxu0 0.0
    %617 = vmatpush1.msra.mxu0 0.0
    %618 = vmatprep.subr.mxu0 0.0
    %619 = vmatpush1.msra.mxu0 0.0
    %620 = vmatprep.subr.mxu0 0.0
    %621 = vmatpush1.msra.mxu0 0.0
    %622 = vmatprep.subr.mxu0 0.0
    %623 = vmatpush1.msra.mxu0 0.0
    %624 = vmatprep.subr.mxu0 0.0
    %625 = vmatpush1.msra.mxu0 0.0
    %626 = vmatprep.subr.mxu0 0.0
    %627 = vmatpush1.msra.mxu0 0.0
    %628 = vmatprep.subr.mxu0 0.0
    %629 = vmatpush1.msra.mxu0 0.0
    %630 = vmatprep.subr.mxu0 0.0
    %631 = vmatpush1.msra.mxu0 0.0
    %632 = vmatprep.subr.mxu0 0.0
    %633 = vmatpush1.msra.mxu0 0.0
    %634 = vmatprep.subr.mxu0 0.0
    %635 = vmatpush1.msra.mxu0 0.0
    %636 = vmatprep.subr.mxu0 0.0
    %637 = vmatpush1.msra.mxu0 0.0
    %638 = vmatprep.subr.mxu0 0.0
    %639 = vmatpush1.msra.mxu0 0.0
    %640 = vmatprep.subr.mxu0 0.0
    %641 = vmatpush1.msra.mxu0 0.0
    %642 = vmatprep.subr.mxu0 0.0
    %643 = vmatpush1.msra.mxu0 0.0
    %644 = vmatprep.subr.mxu0 0.0
    %645 = vmatpush1.msra.mxu0 0.0
    %646 = vmatprep.subr.mxu0 0.0
    %647 = vmatpush1.msra.mxu0 0.0
    %648 = vmatprep.subr.mxu0 0.0
    %649 = vmatpush1.msra.mxu0 0.0
    %650 = vmatprep.subr.mxu0 0.0
    %651 = vmatpush1.msra.mxu0 0.0
    %652 = vmatprep.subr.mxu0 0.0
    %653 = vmatpush1.msra.mxu0 0.0
    %654 = vmatprep.subr.mxu0 0.0
    %655 = vmatpush1.msra.mxu0 0.0
    %656 = vmatprep.subr.mxu0 0.0
    %657 = vmatpush1.msra.mxu0 0.0
    %658 = vmatprep.subr.mxu0 0.0
    %659 = vmatpush1.msra.mxu0 0.0
    %660 = vmatprep.mubr.f32.mxu0 0.0
    %661 = vmatmul.mubr.f32.gmra.mrb[0].mxu0 %v594
    %v662 = vpop.f32.mrb[0].mxu0
    %v663 = vadd.f32 %v592, %v662
    %v664 = vpop.f32.mrb[0].mxu0
    %665 = vdwg.mxu0
    %v666 = vxor.u32 %v663, 2147483648
    %v667 = vmul.f32 %v666, 1.442695
    %v668 = vpow.pop %v667
    %v669 = vadd.f32 %v668, 1.0
    %v670 = vrcp.pop %v669
    %v671 = vmul.f32 1.0, %v670
    %v672 = vtanh.pop %v663
    %v673 = vmul.f32 %v671, %v577
    %675 = vrot.lane.b32.xlu0 %v672, 96
    %v676 = vpop.permute.xlu0 %675
    %v678 = vmul.f32 %v671, %v676
    %680 = vrot.lane.b32.xlu0 %v678, 96
    %v681 = vpop.permute.xlu0 %680
    %v683 = vadd.f32 %v673, %v681
    %v684 = vtanh.pop %v683
    %686 = vrot.lane.b32.xlu0 %v684, 96
    %v687 = vpop.permute.xlu0 %686
    %v689 = vmul.f32 %v671, %v687
    %691 = vrot.lane.b32.xlu0 %v689, 32
    %v692 = vpop.permute.xlu0 %691
    %s694 = scalar_lea.vmem [#allocation7], 10
    %695 = vst.msk [vmem:[%s694] sm:$0x3] %vm164, %v692
    %v696 = vmax.f32 %v590, %v692
    %s697 = scalar_lea.vmem [#allocation2], 12
    %v698 = vld [vmem:[%s697] sm:$0x3]
    %v700 = vsel %vm62, %v696, 0
    %702 = vmatprep.subr.mxu0 0.0
    %703 = vmatpush1.msra.mxu0 %v51
    %704 = vmatprep.subr.mxu0 0.0
    %705 = vmatpush1.msra.mxu0 %v52
    %706 = vmatprep.subr.mxu0 0.0
    %707 = vmatpush1.msra.mxu0 %v53
    %708 = vmatprep.subr.mxu0 0.0
    %709 = vmatpush1.msra.mxu0 %v54
    %710 = vmatprep.subr.mxu0 0.0
    %711 = vmatpush1.msra.mxu0 0.0
    %712 = vmatprep.subr.mxu0 0.0
    %713 = vmatpush1.msra.mxu0 0.0
    %714 = vmatprep.subr.mxu0 0.0
    %715 = vmatpush1.msra.mxu0 0.0
    %716 = vmatprep.subr.mxu0 0.0
    %717 = vmatpush1.msra.mxu0 0.0
    %718 = vmatprep.subr.mxu0 0.0
    %719 = vmatpush1.msra.mxu0 0.0
    %720 = vmatprep.subr.mxu0 0.0
    %721 = vmatpush1.msra.mxu0 0.0
    %722 = vmatprep.subr.mxu0 0.0
    %723 = vmatpush1.msra.mxu0 0.0
    %724 = vmatprep.subr.mxu0 0.0
    %725 = vmatpush1.msra.mxu0 0.0
    %726 = vmatprep.subr.mxu0 0.0
    %727 = vmatpush1.msra.mxu0 0.0
    %728 = vmatprep.subr.mxu0 0.0
    %729 = vmatpush1.msra.mxu0 0.0
    %730 = vmatprep.subr.mxu0 0.0
    %731 = vmatpush1.msra.mxu0 0.0
    %732 = vmatprep.subr.mxu0 0.0
    %733 = vmatpush1.msra.mxu0 0.0
    %734 = vmatprep.subr.mxu0 0.0
    %735 = vmatpush1.msra.mxu0 0.0
    %736 = vmatprep.subr.mxu0 0.0
    %737 = vmatpush1.msra.mxu0 0.0
    %738 = vmatprep.subr.mxu0 0.0
    %739 = vmatpush1.msra.mxu0 0.0
    %740 = vmatprep.subr.mxu0 0.0
    %741 = vmatpush1.msra.mxu0 0.0
    %742 = vmatprep.subr.mxu0 0.0
    %743 = vmatpush1.msra.mxu0 0.0
    %744 = vmatprep.subr.mxu0 0.0
    %745 = vmatpush1.msra.mxu0 0.0
    %746 = vmatprep.subr.mxu0 0.0
    %747 = vmatpush1.msra.mxu0 0.0
    %748 = vmatprep.subr.mxu0 0.0
    %749 = vmatpush1.msra.mxu0 0.0
    %750 = vmatprep.subr.mxu0 0.0
    %751 = vmatpush1.msra.mxu0 0.0
    %752 = vmatprep.subr.mxu0 0.0
    %753 = vmatpush1.msra.mxu0 0.0
    %754 = vmatprep.subr.mxu0 0.0
    %755 = vmatpush1.msra.mxu0 0.0
    %756 = vmatprep.subr.mxu0 0.0
    %757 = vmatpush1.msra.mxu0 0.0
    %758 = vmatprep.subr.mxu0 0.0
    %759 = vmatpush1.msra.mxu0 0.0
    %760 = vmatprep.subr.mxu0 0.0
    %761 = vmatpush1.msra.mxu0 0.0
    %762 = vmatprep.subr.mxu0 0.0
    %763 = vmatpush1.msra.mxu0 0.0
    %764 = vmatprep.subr.mxu0 0.0
    %765 = vmatpush1.msra.mxu0 0.0
    %766 = vmatprep.mubr.f32.mxu0 0.0
    %767 = vmatmul.mubr.f32.gmra.mrb[0].mxu0 %v700
    %v768 = vpop.f32.mrb[0].mxu0
    %v769 = vadd.f32 %v698, %v768
    %v770 = vpop.f32.mrb[0].mxu0
    %771 = vdwg.mxu0
    %v772 = vxor.u32 %v769, 2147483648
    %v773 = vmul.f32 %v772, 1.442695
    %v774 = vpow.pop %v773
    %v775 = vadd.f32 %v774, 1.0
    %v776 = vrcp.pop %v775
    %v777 = vmul.f32 1.0, %v776
    %v778 = vtanh.pop %v769
    %v779 = vmul.f32 %v777, %v683
    %781 = vrot.lane.b32.xlu0 %v778, 96
    %v782 = vpop.permute.xlu0 %781
    %v784 = vmul.f32 %v777, %v782
    %786 = vrot.lane.b32.xlu0 %v784, 96
    %v787 = vpop.permute.xlu0 %786
    %v789 = vadd.f32 %v779, %v787
    %v790 = vtanh.pop %v789
    %792 = vrot.lane.b32.xlu0 %v790, 96
    %v793 = vpop.permute.xlu0 %792
    %v795 = vmul.f32 %v777, %v793
    %797 = vrot.lane.b32.xlu0 %v795, 32
    %v798 = vpop.permute.xlu0 %797
    %s800 = scalar_lea.vmem [#allocation7], 12
    %801 = vst.msk [vmem:[%s800] sm:$0x3] %vm164, %v798
    %v802 = vmax.f32 %v696, %v798
    %s803 = scalar_lea.vmem [#allocation2], 14
    %v804 = vld [vmem:[%s803] sm:$0x3]
    %v806 = vsel %vm62, %v802, 0
    %808 = vmatprep.subr.mxu0 0.0
    %809 = vmatpush1.msra.mxu0 %v51
    %810 = vmatprep.subr.mxu0 0.0
    %811 = vmatpush1.msra.mxu0 %v52
    %812 = vmatprep.subr.mxu0 0.0
    %813 = vmatpush1.msra.mxu0 %v53
    %814 = vmatprep.subr.mxu0 0.0
    %815 = vmatpush1.msra.mxu0 %v54
    %816 = vmatprep.subr.mxu0 0.0
    %817 = vmatpush1.msra.mxu0 0.0
    %818 = vmatprep.subr.mxu0 0.0
    %819 = vmatpush1.msra.mxu0 0.0
    %820 = vmatprep.subr.mxu0 0.0
    %821 = vmatpush1.msra.mxu0 0.0
    %822 = vmatprep.subr.mxu0 0.0
    %823 = vmatpush1.msra.mxu0 0.0
    %824 = vmatprep.subr.mxu0 0.0
    %825 = vmatpush1.msra.mxu0 0.0
    %826 = vmatprep.subr.mxu0 0.0
    %827 = vmatpush1.msra.mxu0 0.0
    %828 = vmatprep.subr.mxu0 0.0
    %829 = vmatpush1.msra.mxu0 0.0
    %830 = vmatprep.subr.mxu0 0.0
    %831 = vmatpush1.msra.mxu0 0.0
    %832 = vmatprep.subr.mxu0 0.0
    %833 = vmatpush1.msra.mxu0 0.0
    %834 = vmatprep.subr.mxu0 0.0
    %835 = vmatpush1.msra.mxu0 0.0
    %836 = vmatprep.subr.mxu0 0.0
    %837 = vmatpush1.msra.mxu0 0.0
    %838 = vmatprep.subr.mxu0 0.0
    %839 = vmatpush1.msra.mxu0 0.0
    %840 = vmatprep.subr.mxu0 0.0
    %841 = vmatpush1.msra.mxu0 0.0
    %842 = vmatprep.subr.mxu0 0.0
    %843 = vmatpush1.msra.mxu0 0.0
    %844 = vmatprep.subr.mxu0 0.0
    %845 = vmatpush1.msra.mxu0 0.0
    %846 = vmatprep.subr.mxu0 0.0
    %847 = vmatpush1.msra.mxu0 0.0
    %848 = vmatprep.subr.mxu0 0.0
    %849 = vmatpush1.msra.mxu0 0.0
    %850 = vmatprep.subr.mxu0 0.0
    %851 = vmatpush1.msra.mxu0 0.0
    %852 = vmatprep.subr.mxu0 0.0
    %853 = vmatpush1.msra.mxu0 0.0
    %854 = vmatprep.subr.mxu0 0.0
    %855 = vmatpush1.msra.mxu0 0.0
    %856 = vmatprep.subr.mxu0 0.0
    %857 = vmatpush1.msra.mxu0 0.0
    %858 = vmatprep.subr.mxu0 0.0
    %859 = vmatpush1.msra.mxu0 0.0
    %860 = vmatprep.subr.mxu0 0.0
    %861 = vmatpush1.msra.mxu0 0.0
    %862 = vmatprep.subr.mxu0 0.0
    %863 = vmatpush1.msra.mxu0 0.0
    %864 = vmatprep.subr.mxu0 0.0
    %865 = vmatpush1.msra.mxu0 0.0
    %866 = vmatprep.subr.mxu0 0.0
    %867 = vmatpush1.msra.mxu0 0.0
    %868 = vmatprep.subr.mxu0 0.0
    %869 = vmatpush1.msra.mxu0 0.0
    %870 = vmatprep.subr.mxu0 0.0
    %871 = vmatpush1.msra.mxu0 0.0
    %872 = vmatprep.mubr.f32.mxu0 0.0
    %873 = vmatmul.mubr.f32.gmra.mrb[0].mxu0 %v806
    %v874 = vpop.f32.mrb[0].mxu0
    %v875 = vadd.f32 %v804, %v874
    %v876 = vpop.f32.mrb[0].mxu0
    %877 = vdwg.mxu0
    %v878 = vxor.u32 %v875, 2147483648
    %v879 = vmul.f32 %v878, 1.442695
    %v880 = vpow.pop %v879
    %v881 = vadd.f32 %v880, 1.0
    %v882 = vrcp.pop %v881
    %v883 = vmul.f32 1.0, %v882
    %v884 = vtanh.pop %v875
    %v885 = vmul.f32 %v883, %v789
    %887 = vrot.lane.b32.xlu0 %v884, 96
    %v888 = vpop.permute.xlu0 %887
    %v890 = vmul.f32 %v883, %v888
    %892 = vrot.lane.b32.xlu0 %v890, 96
    %v893 = vpop.permute.xlu0 %892
    %v895 = vadd.f32 %v885, %v893
    %v896 = vtanh.pop %v895
    %898 = vrot.lane.b32.xlu0 %v896, 96
    %v899 = vpop.permute.xlu0 %898
    %v901 = vmul.f32 %v883, %v899
    %903 = vrot.lane.b32.xlu0 %v901, 32
    %v904 = vpop.permute.xlu0 %903
    %s906 = scalar_lea.vmem [#allocation7], 14
    %907 = vst.msk [vmem:[%s906] sm:$0x3] %vm164, %v904
    %v908 = vmax.f32 %v802, %v904
    %909 = vst.msk [vmem:[#allocation8] sm:$0x3] %vm164, %v908
    %910 = vst.msk [vmem:[#allocation10] sm:$0x3] %vm164, %v895
    // Predicated region
    $region22: #{tpu_custom_call.1} parent=1 // pred_check
      _
    $region23: #{tpu_custom_call.1} parent=1 // pred_check_branch
      %912 = sbr.rel (0) target = $region25
    $region24: #{tpu_custom_call.1} parent=1 // pred_region
      %s914 = ssub.s32 256, 256
      %915 = vsyncadd [#allocation4], %s914
      %s916 = sshll.u32 [#allocation7], 4
      %s917 = int_to_ptr.vmem [resolvable:$true] %s916
      %922 = dma.vmem_to_hbm [thread:$0]  %s917, 256, %s2, [#allocation4], 32, 32, 2
    $region25: #{tpu_custom_call.1} parent=1 // pred_fallthru
      _
    // Predicated region
    $region26: #{tpu_custom_call.1} parent=1 // pred_check
      _
    $region27: #{tpu_custom_call.1} parent=1 // pred_check_branch
      %924 = sbr.rel (0) target = $region29
    $region28: #{tpu_custom_call.1} parent=1 // pred_region
      %s926 = ssub.s32 32, 32
      %927 = vsyncadd [#allocation9], %s926
      %s929 = sshll.u32 [#allocation8], 4
      %s930 = int_to_ptr.vmem [resolvable:$true] %s929
      %932 = dma.vmem_to_hbm [thread:$0]  %s930, 32, %s3, [#allocation9]
    $region29: #{tpu_custom_call.1} parent=1 // pred_fallthru
      _
    // Predicated region
    $region30: #{tpu_custom_call.1} parent=1 // pred_check
      _
    $region31: #{tpu_custom_call.1} parent=1 // pred_check_branch
      %934 = sbr.rel (0) target = $region33
    $region32: #{tpu_custom_call.1} parent=1 // pred_region
      %s936 = ssub.s32 32, 32
      %937 = vsyncadd [#allocation9], %s936
      %s939 = sshll.u32 [#allocation10], 4
      %s940 = int_to_ptr.vmem [resolvable:$true] %s939
      %942 = dma.vmem_to_hbm [thread:$0]  %s940, 32, %s4, [#allocation9]
    $region33: #{tpu_custom_call.1} parent=1 // pred_fallthru
      _
    // Predicated region
    $region34: #{tpu_custom_call.1} parent=1 // pred_check
      _
    $region35: #{tpu_custom_call.1} parent=1 // pred_check_branch
      %944 = sbr.rel (0) target = $region37
    $region36: #{tpu_custom_call.1} parent=1 // pred_region
      %945 = dma.done [#allocation4], 256
    $region37: #{tpu_custom_call.1} parent=1 // pred_fallthru
      _
    // Predicated region
    $region38: #{tpu_custom_call.1} parent=1 // pred_check
      _
    $region39: #{tpu_custom_call.1} parent=1 // pred_check_branch
      %947 = sbr.rel (0) target = $region41
    $region40: #{tpu_custom_call.1} parent=1 // pred_region
      %948 = dma.done [#allocation9], 32
    $region41: #{tpu_custom_call.1} parent=1 // pred_fallthru
      _
    // Predicated region
    $region42: #{tpu_custom_call.1} parent=1 // pred_check
      _
    $region43: #{tpu_custom_call.1} parent=1 // pred_check_branch
      %950 = sbr.rel (0) target = $region45
    $region44: #{tpu_custom_call.1} parent=1 // pred_region
      %951 = dma.done [#allocation9], 32
    $region45: #{tpu_custom_call.1} parent=1 // pred_fallthru
      _
    %952 = vsyncpa [#allocation3], 1
    %953 = vsyncpa [#allocation6], 1
    %954 = vsyncpa [#allocation4], 1
    %955 = vsyncpa [#allocation9], 1

// kernel: tpu_custom_call.1
$region0: #{tpu_custom_call.1}
  #allocation0 [shape = 'u32[]', space=smem, size = 0x4, offset = 0x4, fixed_abs, tag = 'smem constant byte address 0x4 - core index']
  #allocation1 [shape = 'u32[144,128]{1,0:T(1,128)}', space=vmem, size = 0x12000, scoped, tag = 'internal scratch']
  %s0 = inlined_call_operand.hbm [shape: f32[8,2,128], index: 0, kind: input, shape index: {}]
  %s1 = inlined_call_operand.hbm [shape: f32[32,128], index: 1, kind: input, shape index: {}]
  %s2 = inlined_call_operand.hbm [shape: f32[8,2,32], index: 2, kind: output, shape index: {0}]
  %s3 = inlined_call_operand.hbm [shape: f32[2,32], index: 3, kind: output, shape index: {1}]
  %s4 = inlined_call_operand.hbm [shape: f32[2,32], index: 4, kind: output, shape index: {2}]
  %5 = xla_tuple %s2, %s3, %s4
  %s6 = sld [smem:[#allocation0]]
  $region46: #{tpu_custom_call.1} parent=0
    _
  %s8 = ssub.s32 1, %s6
  %s9 = scalar_select 0, %s8, %s6
  $region1: #{tpu_custom_call.1} parent=0
    #allocation2 [shape = 'u8[8192]{0}', space=vmem, size = 0x2000, scoped, tag = 'input window, operand 0, single buffered']
    #allocation3 [shape = 's32[1]{0}', space=sflag, size = 0x4, scoped, tag = 'scoped memory for tpu_custom_call.1']
    #allocation4 [shape = 's32[1]{0}', space=sflag, size = 0x4, scoped, tag = 'scoped memory for tpu_custom_call.1']
    #allocation5 [shape = 'u8[16384]{0}', space=vmem, size = 0x4000, scoped, tag = 'input window, operand 1, single buffered']
    #allocation6 [shape = 's32[1]{0}', space=sflag, size = 0x4, scoped, tag = 'scoped memory for tpu_custom_call.1']
    #allocation7 [shape = 'u8[8192]{0}', space=vmem, size = 0x2000, scoped, tag = 'output window, operand 0, single buffered']
    #allocation8 [shape = 'u8[1024]{0}', space=vmem, size = 0x400, scoped, tag = 'output window, operand 1, single buffered']
    #allocation9 [shape = 's32[1]{0}', space=sflag, size = 0x4, scoped, tag = 'scoped memory for tpu_custom_call.1']
    #allocation10 [shape = 'u8[1024]{0}', space=vmem, size = 0x400, scoped, tag = 'output window, operand 2, single buffered']
    %10 = vsyncpa [#allocation3], 0
    %11 = vsyncpa [#allocation6], 0
    %12 = vsyncpa [#allocation4], 0
    %13 = vsyncpa [#allocation9], 0
    // Predicated region
    $region2: #{tpu_custom_call.1} parent=1 // pred_check
      _
    $region3: #{tpu_custom_call.1} parent=1 // pred_check_branch
      %15 = sbr.rel (0) target = $region5
    $region4: #{tpu_custom_call.1} parent=1 // pred_region
      %s17 = ssub.s32 256, 256
      %18 = vsyncadd [#allocation3], %s17
      %s19 = sshll.u32 [#allocation2], 4
      %s20 = int_to_ptr.vmem [resolvable:$true] %s19
      %25 = dma.hbm_to_vmem [thread:$0]  %s0, 256, %s20, [#allocation3], 32, 32, 2
    $region5: #{tpu_custom_call.1} parent=1 // pred_fallthru
      _
    // Predicated region
    $region6: #{tpu_custom_call.1} parent=1 // pred_check
      _
    $region7: #{tpu_custom_call.1} parent=1 // pred_check_branch
      %27 = sbr.rel (0) target = $region9
    $region8: #{tpu_custom_call.1} parent=1 // pred_region
      %s29 = ssub.s32 512, 512
      %30 = vsyncadd [#allocation6], %s29
      %s31 = sshll.u32 [#allocation5], 4
      %s32 = int_to_ptr.vmem [resolvable:$true] %s31
      %37 = dma.hbm_to_vmem [thread:$0]  %s1, 512, %s32, [#allocation6], 128, 128, 8
    $region9: #{tpu_custom_call.1} parent=1 // pred_fallthru
      _
    // Predicated region
    $region10: #{tpu_custom_call.1} parent=1 // pred_check
      _
    $region11: #{tpu_custom_call.1} parent=1 // pred_check_branch
      %39 = sbr.rel (0) target = $region13
    $region12: #{tpu_custom_call.1} parent=1 // pred_region
      %40 = dma.done [#allocation3], 256
    $region13: #{tpu_custom_call.1} parent=1 // pred_fallthru
      _
    // Predicated region
    $region14: #{tpu_custom_call.1} parent=1 // pred_check
      _
    $region15: #{tpu_custom_call.1} parent=1 // pred_check_branch
      %42 = sbr.rel (0) target = $region17
    $region16: #{tpu_custom_call.1} parent=1 // pred_region
      %43 = dma.done [#allocation6], 512
    $region17: #{tpu_custom_call.1} parent=1 // pred_fallthru
      _
    %p44 = scmp.eq.s32.totalorder 0, 0
    // Predicated region
    $region18: #{tpu_custom_call.1} parent=1 // pred_check
      %p45 = pneg %p44
    $region19: #{tpu_custom_call.1} parent=1 // pred_check_branch
      %47 = sbr.rel (%p45) target = $region21
    $region20: #{tpu_custom_call.1} parent=1 // pred_region
      %vm48 = vcmask 254976
      %49 = vst.msk [vmem:[#allocation8] sm:$0x3] %vm48, 0.0
      %50 = vst.msk [vmem:[#allocation10] sm:$0x3] %vm48, 0.0
    $region21: #{tpu_custom_call.1} parent=1 // pred_fallthru
      _
    %v51 = vld [vmem:[#allocation5] sm:$0xff]
    %v52 = vld [vmem:[#allocation5 + $0x8] sm:$0xff]
    %v53 = vld [vmem:[#allocation5 + $0x10] sm:$0xff]
    %v54 = vld [vmem:[#allocation5 + $0x18] sm:$0xff]
    %v55 = vld [vmem:[#allocation8] sm:$0x3]
    %v56 = vld [vmem:[#allocation10] sm:$0x3]
    %s57 = scalar_select %p44, 1, 0
    %v58 = vstv %s57
    %vm59 = vcmp.eq.s32.totalorder %v58, 1
    %v60 = vsel %vm59, -inf, %v55
    %v61 = vld [vmem:[#allocation2] sm:$0x3]
    %vm62 = vcmask 261120
    %v64 = vsel %vm62, %v55, 0
    %66 = vmatprep.subr.mxu0 0.0
    %67 = vmatpush1.msra.mxu0 %v51
    %68 = vmatprep.subr.mxu0 0.0
    %69 = vmatpush1.msra.mxu0 %v52
    %70 = vmatprep.subr.mxu0 0.0
    %71 = vmatpush1.msra.mxu0 %v53
    %72 = vmatprep.subr.mxu0 0.0
    %73 = vmatpush1.msra.mxu0 %v54
    %74 = vmatprep.subr.mxu0 0.0
    %75 = vmatpush1.msra.mxu0 0.0
    %76 = vmatprep.subr.mxu0 0.0
    %77 = vmatpush1.msra.mxu0 0.0
    %78 = vmatprep.subr.mxu0 0.0
    %79 = vmatpush1.msra.mxu0 0.0
    %80 = vmatprep.subr.mxu0 0.0
    %81 = vmatpush1.msra.mxu0 0.0
    %82 = vmatprep.subr.mxu0 0.0
    %83 = vmatpush1.msra.mxu0 0.0
    %84 = vmatprep.subr.mxu0 0.0
    %85 = vmatpush1.msra.mxu0 0.0
    %86 = vmatprep.subr.mxu0 0.0
    %87 = vmatpush1.msra.mxu0 0.0
    %88 = vmatprep.subr.mxu0 0.0
    %89 = vmatpush1.msra.mxu0 0.0
    %90 = vmatprep.subr.mxu0 0.0
    %91 = vmatpush1.msra.mxu0 0.0
    %92 = vmatprep.subr.mxu0 0.0
    %93 = vmatpush1.msra.mxu0 0.0
    %94 = vmatprep.subr.mxu0 0.0
    %95 = vmatpush1.msra.mxu0 0.0
    %96 = vmatprep.subr.mxu0 0.0
    %97 = vmatpush1.msra.mxu0 0.0
    %98 = vmatprep.subr.mxu0 0.0
    %99 = vmatpush1.msra.mxu0 0.0
    %100 = vmatprep.subr.mxu0 0.0
    %101 = vmatpush1.msra.mxu0 0.0
    %102 = vmatprep.subr.mxu0 0.0
    %103 = vmatpush1.msra.mxu0 0.0
    %104 = vmatprep.subr.mxu0 0.0
    %105 = vmatpush1.msra.mxu0 0.0
    %106 = vmatprep.subr.mxu0 0.0
    %107 = vmatpush1.msra.mxu0 0.0
    %108 = vmatprep.subr.mxu0 0.0
    %109 = vmatpush1.msra.mxu0 0.0
    %110 = vmatprep.subr.mxu0 0.0
    %111 = vmatpush1.msra.mxu0 0.0
    %112 = vmatprep.subr.mxu0 0.0
    %113 = vmatpush1.msra.mxu0 0.0
    %114 = vmatprep.subr.mxu0 0.0
    %115 = vmatpush1.msra.mxu0 0.0
    %116 = vmatprep.subr.mxu0 0.0
    %117 = vmatpush1.msra.mxu0 0.0
    %118 = vmatprep.subr.mxu0 0.0
    %119 = vmatpush1.msra.mxu0 0.0
    %120 = vmatprep.subr.mxu0 0.0
    %121 = vmatpush1.msra.mxu0 0.0
    %122 = vmatprep.subr.mxu0 0.0
    %123 = vmatpush1.msra.mxu0 0.0
    %124 = vmatprep.subr.mxu0 0.0
    %125 = vmatpush1.msra.mxu0 0.0
    %126 = vmatprep.subr.mxu0 0.0
    %127 = vmatpush1.msra.mxu0 0.0
    %128 = vmatprep.subr.mxu0 0.0
    %129 = vmatpush1.msra.mxu0 0.0
    %130 = vmatprep.mubr.f32.mxu0 0.0
    %131 = vmatmul.mubr.f32.gmra.mrb[0].mxu0 %v64
    %v132 = vpop.f32.mrb[0].mxu0
    %v133 = vadd.f32 %v61, %v132
    %v134 = vpop.f32.mrb[0].mxu0
    %135 = vdwg.mxu0
    %v136 = vxor.u32 %v133, 2147483648
    %v137 = vmul.f32 %v136, 1.442695
    %v138 = vpow.pop %v137
    %v139 = vadd.f32 %v138, 1.0
    %v140 = vrcp.pop %v139
    %v141 = vmul.f32 1.0, %v140
    %v142 = vtanh.pop %v133
    %v143 = vmul.f32 %v141, %v56
    %145 = vrot.lane.b32.xlu0 %v142, 96
    %v146 = vpop.permute.xlu0 %145
    %v148 = vmul.f32 %v141, %v146
    %150 = vrot.lane.b32.xlu0 %v148, 96
    %v151 = vpop.permute.xlu0 %150
    %v153 = vadd.f32 %v143, %v151
    %v154 = vtanh.pop %v153
    %156 = vrot.lane.b32.xlu0 %v154, 96
    %v157 = vpop.permute.xlu0 %156
    %v159 = vmul.f32 %v141, %v157
    %161 = vrot.lane.b32.xlu0 %v159, 32
    %v162 = vpop.permute.xlu0 %161
    %vm164 = vcmask 254976
    %165 = vst.msk [vmem:[#allocation7] sm:$0x3] %vm164, %v162
    %v166 = vmax.f32 %v60, %v162
    %s167 = scalar_lea.vmem [#allocation2], 2
    %v168 = vld [vmem:[%s167] sm:$0x3]
    %v170 = vsel %vm62, %v166, 0
    %172 = vmatprep.subr.mxu0 0.0
    %173 = vmatpush1.msra.mxu0 %v51
    %174 = vmatprep.subr.mxu0 0.0
    %175 = vmatpush1.msra.mxu0 %v52
    %176 = vmatprep.subr.mxu0 0.0
    %177 = vmatpush1.msra.mxu0 %v53
    %178 = vmatprep.subr.mxu0 0.0
    %179 = vmatpush1.msra.mxu0 %v54
    %180 = vmatprep.subr.mxu0 0.0
    %181 = vmatpush1.msra.mxu0 0.0
    %182 = vmatprep.subr.mxu0 0.0
    %183 = vmatpush1.msra.mxu0 0.0
    %184 = vmatprep.subr.mxu0 0.0
    %185 = vmatpush1.msra.mxu0 0.0
    %186 = vmatprep.subr.mxu0 0.0
    %187 = vmatpush1.msra.mxu0 0.0
    %188 = vmatprep.subr.mxu0 0.0
    %189 = vmatpush1.msra.mxu0 0.0
    %190 = vmatprep.subr.mxu0 0.0
    %191 = vmatpush1.msra.mxu0 0.0
    %192 = vmatprep.subr.mxu0 0.0
    %193 = vmatpush1.msra.mxu0 0.0
    %194 = vmatprep.subr.mxu0 0.0
    %195 = vmatpush1.msra.mxu0 0.0
    %196 = vmatprep.subr.mxu0 0.0
    %197 = vmatpush1.msra.mxu0 0.0
    %198 = vmatprep.subr.mxu0 0.0
    %199 = vmatpush1.msra.mxu0 0.0
    %200 = vmatprep.subr.mxu0 0.0
    %201 = vmatpush1.msra.mxu0 0.0
    %202 = vmatprep.subr.mxu0 0.0
    %203 = vmatpush1.msra.mxu0 0.0
    %204 = vmatprep.subr.mxu0 0.0
    %205 = vmatpush1.msra.mxu0 0.0
    %206 = vmatprep.subr.mxu0 0.0
    %207 = vmatpush1.msra.mxu0 0.0
    %208 = vmatprep.subr.mxu0 0.0
    %209 = vmatpush1.msra.mxu0 0.0
    %210 = vmatprep.subr.mxu0 0.0
    %211 = vmatpush1.msra.mxu0 0.0
    %212 = vmatprep.subr.mxu0 0.0
    %213 = vmatpush1.msra.mxu0 0.0
    %214 = vmatprep.subr.mxu0 0.0
    %215 = vmatpush1.msra.mxu0 0.0
    %216 = vmatprep.subr.mxu0 0.0
    %217 = vmatpush1.msra.mxu0 0.0
    %218 = vmatprep.subr.mxu0 0.0
    %219 = vmatpush1.msra.mxu0 0.0
    %220 = vmatprep.subr.mxu0 0.0
    %221 = vmatpush1.msra.mxu0 0.0
    %222 = vmatprep.subr.mxu0 0.0
    %223 = vmatpush1.msra.mxu0 0.0
    %224 = vmatprep.subr.mxu0 0.0
    %225 = vmatpush1.msra.mxu0 0.0
    %226 = vmatprep.subr.mxu0 0.0
    %227 = vmatpush1.msra.mxu0 0.0
    %228 = vmatprep.subr.mxu0 0.0
    %229 = vmatpush1.msra.mxu0 0.0
    %230 = vmatprep.subr.mxu0 0.0
    %231 = vmatpush1.msra.mxu0 0.0
    %232 = vmatprep.subr.mxu0 0.0
    %233 = vmatpush1.msra.mxu0 0.0
    %234 = vmatprep.subr.mxu0 0.0
    %235 = vmatpush1.msra.mxu0 0.0
    %236 = vmatprep.mubr.f32.mxu0 0.0
    %237 = vmatmul.mubr.f32.gmra.mrb[0].mxu0 %v170
    %v238 = vpop.f32.mrb[0].mxu0
    %v239 = vadd.f32 %v168, %v238
    %v240 = vpop.f32.mrb[0].mxu0
    %241 = vdwg.mxu0
    %v242 = vxor.u32 %v239, 2147483648
    %v243 = vmul.f32 %v242, 1.442695
    %v244 = vpow.pop %v243
    %v245 = vadd.f32 %v244, 1.0
    %v246 = vrcp.pop %v245
    %v247 = vmul.f32 1.0, %v246
    %v248 = vtanh.pop %v239
    %v249 = vmul.f32 %v247, %v153
    %251 = vrot.lane.b32.xlu0 %v248, 96
    %v252 = vpop.permute.xlu0 %251
    %v254 = vmul.f32 %v247, %v252
    %256 = vrot.lane.b32.xlu0 %v254, 96
    %v257 = vpop.permute.xlu0 %256
    %v259 = vadd.f32 %v249, %v257
    %v260 = vtanh.pop %v259
    %262 = vrot.lane.b32.xlu0 %v260, 96
    %v263 = vpop.permute.xlu0 %262
    %v265 = vmul.f32 %v247, %v263
    %267 = vrot.lane.b32.xlu0 %v265, 32
    %v268 = vpop.permute.xlu0 %267
    %s270 = scalar_lea.vmem [#allocation7], 2
    %271 = vst.msk [vmem:[%s270] sm:$0x3] %vm164, %v268
    %v272 = vmax.f32 %v166, %v268
    %s273 = scalar_lea.vmem [#allocation2], 4
    %v274 = vld [vmem:[%s273] sm:$0x3]
    %v276 = vsel %vm62, %v272, 0
    %278 = vmatprep.subr.mxu0 0.0
    %279 = vmatpush1.msra.mxu0 %v51
    %280 = vmatprep.subr.mxu0 0.0
    %281 = vmatpush1.msra.mxu0 %v52
    %282 = vmatprep.subr.mxu0 0.0
    %283 = vmatpush1.msra.mxu0 %v53
    %284 = vmatprep.subr.mxu0 0.0
    %285 = vmatpush1.msra.mxu0 %v54
    %286 = vmatprep.subr.mxu0 0.0
    %287 = vmatpush1.msra.mxu0 0.0
    %288 = vmatprep.subr.mxu0 0.0
    %289 = vmatpush1.msra.mxu0 0.0
    %290 = vmatprep.subr.mxu0 0.0
    %291 = vmatpush1.msra.mxu0 0.0
    %292 = vmatprep.subr.mxu0 0.0
    %293 = vmatpush1.msra.mxu0 0.0
    %294 = vmatprep.subr.mxu0 0.0
    %295 = vmatpush1.msra.mxu0 0.0
    %296 = vmatprep.subr.mxu0 0.0
    %297 = vmatpush1.msra.mxu0 0.0
    %298 = vmatprep.subr.mxu0 0.0
    %299 = vmatpush1.msra.mxu0 0.0
    %300 = vmatprep.subr.mxu0 0.0
    %301 = vmatpush1.msra.mxu0 0.0
    %302 = vmatprep.subr.mxu0 0.0
    %303 = vmatpush1.msra.mxu0 0.0
    %304 = vmatprep.subr.mxu0 0.0
    %305 = vmatpush1.msra.mxu0 0.0
    %306 = vmatprep.subr.mxu0 0.0
    %307 = vmatpush1.msra.mxu0 0.0
    %308 = vmatprep.subr.mxu0 0.0
    %309 = vmatpush1.msra.mxu0 0.0
    %310 = vmatprep.subr.mxu0 0.0
    %311 = vmatpush1.msra.mxu0 0.0
    %312 = vmatprep.subr.mxu0 0.0
    %313 = vmatpush1.msra.mxu0 0.0
    %314 = vmatprep.subr.mxu0 0.0
    %315 = vmatpush1.msra.mxu0 0.0
    %316 = vmatprep.subr.mxu0 0.0
    %317 = vmatpush1.msra.mxu0 0.0
    %318 = vmatprep.subr.mxu0 0.0
    %319 = vmatpush1.msra.mxu0 0.0
    %320 = vmatprep.subr.mxu0 0.0
    %321 = vmatpush1.msra.mxu0 0.0
    %322 = vmatprep.subr.mxu0 0.0
    %323 = vmatpush1.msra.mxu0 0.0
    %324 = vmatprep.subr.mxu0 0.0
    %325 = vmatpush1.msra.mxu0 0.0
    %326 = vmatprep.subr.mxu0 0.0
    %327 = vmatpush1.msra.mxu0 0.0
    %328 = vmatprep.subr.mxu0 0.0
    %329 = vmatpush1.msra.mxu0 0.0
    %330 = vmatprep.subr.mxu0 0.0
    %331 = vmatpush1.msra.mxu0 0.0
    %332 = vmatprep.subr.mxu0 0.0
    %333 = vmatpush1.msra.mxu0 0.0
    %334 = vmatprep.subr.mxu0 0.0
    %335 = vmatpush1.msra.mxu0 0.0
    %336 = vmatprep.subr.mxu0 0.0
    %337 = vmatpush1.msra.mxu0 0.0
    %338 = vmatprep.subr.mxu0 0.0
    %339 = vmatpush1.msra.mxu0 0.0
    %340 = vmatprep.subr.mxu0 0.0
    %341 = vmatpush1.msra.mxu0 0.0
    %342 = vmatprep.mubr.f32.mxu0 0.0
    %343 = vmatmul.mubr.f32.gmra.mrb[0].mxu0 %v276
    %v344 = vpop.f32.mrb[0].mxu0
    %v345 = vadd.f32 %v274, %v344
    %v346 = vpop.f32.mrb[0].mxu0
    %347 = vdwg.mxu0
    %v348 = vxor.u32 %v345, 2147483648
    %v349 = vmul.f32 %v348, 1.442695
    %v350 = vpow.pop %v349
    %v351 = vadd.f32 %v350, 1.0
    %v352 = vrcp.pop %v351
    %v353 = vmul.f32 1.0, %v352
    %v354 = vtanh.pop %v345
    %v355 = vmul.f32 %v353, %v259
    %357 = vrot.lane.b32.xlu0 %v354, 96
    %v358 = vpop.permute.xlu0 %357
    %v360 = vmul.f32 %v353, %v358
    %362 = vrot.lane.b32.xlu0 %v360, 96
    %v363 = vpop.permute.xlu0 %362
    %v365 = vadd.f32 %v355, %v363
    %v366 = vtanh.pop %v365
    %368 = vrot.lane.b32.xlu0 %v366, 96
    %v369 = vpop.permute.xlu0 %368
    %v371 = vmul.f32 %v353, %v369
    %373 = vrot.lane.b32.xlu0 %v371, 32
    %v374 = vpop.permute.xlu0 %373
    %s376 = scalar_lea.vmem [#allocation7], 4
    %377 = vst.msk [vmem:[%s376] sm:$0x3] %vm164, %v374
    %v378 = vmax.f32 %v272, %v374
    %s379 = scalar_lea.vmem [#allocation2], 6
    %v380 = vld [vmem:[%s379] sm:$0x3]
    %v382 = vsel %vm62, %v378, 0
    %384 = vmatprep.subr.mxu0 0.0
    %385 = vmatpush1.msra.mxu0 %v51
    %386 = vmatprep.subr.mxu0 0.0
    %387 = vmatpush1.msra.mxu0 %v52
    %388 = vmatprep.subr.mxu0 0.0
    %389 = vmatpush1.msra.mxu0 %v53
    %390 = vmatprep.subr.mxu0 0.0
    %391 = vmatpush1.msra.mxu0 %v54
    %392 = vmatprep.subr.mxu0 0.0
    %393 = vmatpush1.msra.mxu0 0.0
    %394 = vmatprep.subr.mxu0 0.0
    %395 = vmatpush1.msra.mxu0 0.0
    %396 = vmatprep.subr.mxu0 0.0
    %397 = vmatpush1.msra.mxu0 0.0
    %398 = vmatprep.subr.mxu0 0.0
    %399 = vmatpush1.msra.mxu0 0.0
    %400 = vmatprep.subr.mxu0 0.0
    %401 = vmatpush1.msra.mxu0 0.0
    %402 = vmatprep.subr.mxu0 0.0
    %403 = vmatpush1.msra.mxu0 0.0
    %404 = vmatprep.subr.mxu0 0.0
    %405 = vmatpush1.msra.mxu0 0.0
    %406 = vmatprep.subr.mxu0 0.0
    %407 = vmatpush1.msra.mxu0 0.0
    %408 = vmatprep.subr.mxu0 0.0
    %409 = vmatpush1.msra.mxu0 0.0
    %410 = vmatprep.subr.mxu0 0.0
    %411 = vmatpush1.msra.mxu0 0.0
    %412 = vmatprep.subr.mxu0 0.0
    %413 = vmatpush1.msra.mxu0 0.0
    %414 = vmatprep.subr.mxu0 0.0
    %415 = vmatpush1.msra.mxu0 0.0
    %416 = vmatprep.subr.mxu0 0.0
    %417 = vmatpush1.msra.mxu0 0.0
    %418 = vmatprep.subr.mxu0 0.0
    %419 = vmatpush1.msra.mxu0 0.0
    %420 = vmatprep.subr.mxu0 0.0
    %421 = vmatpush1.msra.mxu0 0.0
    %422 = vmatprep.subr.mxu0 0.0
    %423 = vmatpush1.msra.mxu0 0.0
    %424 = vmatprep.subr.mxu0 0.0
    %425 = vmatpush1.msra.mxu0 0.0
    %426 = vmatprep.subr.mxu0 0.0
    %427 = vmatpush1.msra.mxu0 0.0
    %428 = vmatprep.subr.mxu0 0.0
    %429 = vmatpush1.msra.mxu0 0.0
    %430 = vmatprep.subr.mxu0 0.0
    %431 = vmatpush1.msra.mxu0 0.0
    %432 = vmatprep.subr.mxu0 0.0
    %433 = vmatpush1.msra.mxu0 0.0
    %434 = vmatprep.subr.mxu0 0.0
    %435 = vmatpush1.msra.mxu0 0.0
    %436 = vmatprep.subr.mxu0 0.0
    %437 = vmatpush1.msra.mxu0 0.0
    %438 = vmatprep.subr.mxu0 0.0
    %439 = vmatpush1.msra.mxu0 0.0
    %440 = vmatprep.subr.mxu0 0.0
    %441 = vmatpush1.msra.mxu0 0.0
    %442 = vmatprep.subr.mxu0 0.0
    %443 = vmatpush1.msra.mxu0 0.0
    %444 = vmatprep.subr.mxu0 0.0
    %445 = vmatpush1.msra.mxu0 0.0
    %446 = vmatprep.subr.mxu0 0.0
    %447 = vmatpush1.msra.mxu0 0.0
    %448 = vmatprep.mubr.f32.mxu0 0.0
    %449 = vmatmul.mubr.f32.gmra.mrb[0].mxu0 %v382
    %v450 = vpop.f32.mrb[0].mxu0
    %v451 = vadd.f32 %v380, %v450
    %v452 = vpop.f32.mrb[0].mxu0
    %453 = vdwg.mxu0
    %v454 = vxor.u32 %v451, 2147483648
    %v455 = vmul.f32 %v454, 1.442695
    %v456 = vpow.pop %v455
    %v457 = vadd.f32 %v456, 1.0
    %v458 = vrcp.pop %v457
    %v459 = vmul.f32 1.0, %v458
    %v460 = vtanh.pop %v451
    %v461 = vmul.f32 %v459, %v365
    %463 = vrot.lane.b32.xlu0 %v460, 96
    %v464 = vpop.permute.xlu0 %463
    %v466 = vmul.f32 %v459, %v464
    %468 = vrot.lane.b32.xlu0 %v466, 96
    %v469 = vpop.permute.xlu0 %468
    %v471 = vadd.f32 %v461, %v469
    %v472 = vtanh.pop %v471
    %474 = vrot.lane.b32.xlu0 %v472, 96
    %v475 = vpop.permute.xlu0 %474
    %v477 = vmul.f32 %v459, %v475
    %479 = vrot.lane.b32.xlu0 %v477, 32
    %v480 = vpop.permute.xlu0 %479
    %s482 = scalar_lea.vmem [#allocation7], 6
    %483 = vst.msk [vmem:[%s482] sm:$0x3] %vm164, %v480
    %v484 = vmax.f32 %v378, %v480
    %s485 = scalar_lea.vmem [#allocation2], 8
    %v486 = vld [vmem:[%s485] sm:$0x3]
    %v488 = vsel %vm62, %v484, 0
    %490 = vmatprep.subr.mxu0 0.0
    %491 = vmatpush1.msra.mxu0 %v51
    %492 = vmatprep.subr.mxu0 0.0
    %493 = vmatpush1.msra.mxu0 %v52
    %494 = vmatprep.subr.mxu0 0.0
    %495 = vmatpush1.msra.mxu0 %v53
    %496 = vmatprep.subr.mxu0 0.0
    %497 = vmatpush1.msra.mxu0 %v54
    %498 = vmatprep.subr.mxu0 0.0
    %499 = vmatpush1.msra.mxu0 0.0
    %500 = vmatprep.subr.mxu0 0.0
    %501 = vmatpush1.msra.mxu0 0.0
    %502 = vmatprep.subr.mxu0 0.0
    %503 = vmatpush1.msra.mxu0 0.0
    %504 = vmatprep.subr.mxu0 0.0
    %505 = vmatpush1.msra.mxu0 0.0
    %506 = vmatprep.subr.mxu0 0.0
    %507 = vmatpush1.msra.mxu0 0.0
    %508 = vmatprep.subr.mxu0 0.0
    %509 = vmatpush1.msra.mxu0 0.0
    %510 = vmatprep.subr.mxu0 0.0
    %511 = vmatpush1.msra.mxu0 0.0
    %512 = vmatprep.subr.mxu0 0.0
    %513 = vmatpush1.msra.mxu0 0.0
    %514 = vmatprep.subr.mxu0 0.0
    %515 = vmatpush1.msra.mxu0 0.0
    %516 = vmatprep.subr.mxu0 0.0
    %517 = vmatpush1.msra.mxu0 0.0
    %518 = vmatprep.subr.mxu0 0.0
    %519 = vmatpush1.msra.mxu0 0.0
    %520 = vmatprep.subr.mxu0 0.0
    %521 = vmatpush1.msra.mxu0 0.0
    %522 = vmatprep.subr.mxu0 0.0
    %523 = vmatpush1.msra.mxu0 0.0
    %524 = vmatprep.subr.mxu0 0.0
    %525 = vmatpush1.msra.mxu0 0.0
    %526 = vmatprep.subr.mxu0 0.0
    %527 = vmatpush1.msra.mxu0 0.0
    %528 = vmatprep.subr.mxu0 0.0
    %529 = vmatpush1.msra.mxu0 0.0
    %530 = vmatprep.subr.mxu0 0.0
    %531 = vmatpush1.msra.mxu0 0.0
    %532 = vmatprep.subr.mxu0 0.0
    %533 = vmatpush1.msra.mxu0 0.0
    %534 = vmatprep.subr.mxu0 0.0
    %535 = vmatpush1.msra.mxu0 0.0
    %536 = vmatprep.subr.mxu0 0.0
    %537 = vmatpush1.msra.mxu0 0.0
    %538 = vmatprep.subr.mxu0 0.0
    %539 = vmatpush1.msra.mxu0 0.0
    %540 = vmatprep.subr.mxu0 0.0
    %541 = vmatpush1.msra.mxu0 0.0
    %542 = vmatprep.subr.mxu0 0.0
    %543 = vmatpush1.msra.mxu0 0.0
    %544 = vmatprep.subr.mxu0 0.0
    %545 = vmatpush1.msra.mxu0 0.0
    %546 = vmatprep.subr.mxu0 0.0
    %547 = vmatpush1.msra.mxu0 0.0
    %548 = vmatprep.subr.mxu0 0.0
    %549 = vmatpush1.msra.mxu0 0.0
    %550 = vmatprep.subr.mxu0 0.0
    %551 = vmatpush1.msra.mxu0 0.0
    %552 = vmatprep.subr.mxu0 0.0
    %553 = vmatpush1.msra.mxu0 0.0
    %554 = vmatprep.mubr.f32.mxu0 0.0
    %555 = vmatmul.mubr.f32.gmra.mrb[0].mxu0 %v488
    %v556 = vpop.f32.mrb[0].mxu0
    %v557 = vadd.f32 %v486, %v556
    %v558 = vpop.f32.mrb[0].mxu0
    %559 = vdwg.mxu0
    %v560 = vxor.u32 %v557, 2147483648
    %v561 = vmul.f32 %v560, 1.442695
    %v562 = vpow.pop %v561
    %v563 = vadd.f32 %v562, 1.0
    %v564 = vrcp.pop %v563
    %v565 = vmul.f32 1.0, %v564
    %v566 = vtanh.pop %v557
    %v567 = vmul.f32 %v565, %v471
    %569 = vrot.lane.b32.xlu0 %v566, 96
    %v570 = vpop.permute.xlu0 %569
    %v572 = vmul.f32 %v565, %v570
    %574 = vrot.lane.b32.xlu0 %v572, 96
    %v575 = vpop.permute.xlu0 %574
    %v577 = vadd.f32 %v567, %v575
    %v578 = vtanh.pop %v577
    %580 = vrot.lane.b32.xlu0 %v578, 96
    %v581 = vpop.permute.xlu0 %580
    %v583 = vmul.f32 %v565, %v581
    %585 = vrot.lane.b32.xlu0 %v583, 32
    %v586 = vpop.permute.xlu0 %585
    %s588 = scalar_lea.vmem [#allocation7], 8
    %589 = vst.msk [vmem:[%s588] sm:$0x3] %vm164, %v586
    %v590 = vmax.f32 %v484, %v586
    %s591 = scalar_lea.vmem [#allocation2], 10
    %v592 = vld [vmem:[%s591] sm:$0x3]
    %v594 = vsel %vm62, %v590, 0
    %596 = vmatprep.subr.mxu0 0.0
    %597 = vmatpush1.msra.mxu0 %v51
    %598 = vmatprep.subr.mxu0 0.0
    %599 = vmatpush1.msra.mxu0 %v52
    %600 = vmatprep.subr.mxu0 0.0
    %601 = vmatpush1.msra.mxu0 %v53
    %602 = vmatprep.subr.mxu0 0.0
    %603 = vmatpush1.msra.mxu0 %v54
    %604 = vmatprep.subr.mxu0 0.0
    %605 = vmatpush1.msra.mxu0 0.0
    %606 = vmatprep.subr.mxu0 0.0
    %607 = vmatpush1.msra.mxu0 0.0
    %608 = vmatprep.subr.mxu0 0.0
    %609 = vmatpush1.msra.mxu0 0.0
    %610 = vmatprep.subr.mxu0 0.0
    %611 = vmatpush1.msra.mxu0 0.0
    %612 = vmatprep.subr.mxu0 0.0
    %613 = vmatpush1.msra.mxu0 0.0
    %614 = vmatprep.subr.mxu0 0.0
    %615 = vmatpush1.msra.mxu0 0.0
    %616 = vmatprep.subr.mxu0 0.0
    %617 = vmatpush1.msra.mxu0 0.0
    %618 = vmatprep.subr.mxu0 0.0
    %619 = vmatpush1.msra.mxu0 0.0
    %620 = vmatprep.subr.mxu0 0.0
    %621 = vmatpush1.msra.mxu0 0.0
    %622 = vmatprep.subr.mxu0 0.0
    %623 = vmatpush1.msra.mxu0 0.0
    %624 = vmatprep.subr.mxu0 0.0
    %625 = vmatpush1.msra.mxu0 0.0
    %626 = vmatprep.subr.mxu0 0.0
    %627 = vmatpush1.msra.mxu0 0.0
    %628 = vmatprep.subr.mxu0 0.0
    %629 = vmatpush1.msra.mxu0 0.0
    %630 = vmatprep.subr.mxu0 0.0
    %631 = vmatpush1.msra.mxu0 0.0
    %632 = vmatprep.subr.mxu0 0.0
    %633 = vmatpush1.msra.mxu0 0.0
    %634 = vmatprep.subr.mxu0 0.0
    %635 = vmatpush1.msra.mxu0 0.0
    %636 = vmatprep.subr.mxu0 0.0
    %637 = vmatpush1.msra.mxu0 0.0
    %638 = vmatprep.subr.mxu0 0.0
    %639 = vmatpush1.msra.mxu0 0.0
    %640 = vmatprep.subr.mxu0 0.0
    %641 = vmatpush1.msra.mxu0 0.0
    %642 = vmatprep.subr.mxu0 0.0
    %643 = vmatpush1.msra.mxu0 0.0
    %644 = vmatprep.subr.mxu0 0.0
    %645 = vmatpush1.msra.mxu0 0.0
    %646 = vmatprep.subr.mxu0 0.0
    %647 = vmatpush1.msra.mxu0 0.0
    %648 = vmatprep.subr.mxu0 0.0
    %649 = vmatpush1.msra.mxu0 0.0
    %650 = vmatprep.subr.mxu0 0.0
    %651 = vmatpush1.msra.mxu0 0.0
    %652 = vmatprep.subr.mxu0 0.0
    %653 = vmatpush1.msra.mxu0 0.0
    %654 = vmatprep.subr.mxu0 0.0
    %655 = vmatpush1.msra.mxu0 0.0
    %656 = vmatprep.subr.mxu0 0.0
    %657 = vmatpush1.msra.mxu0 0.0
    %658 = vmatprep.subr.mxu0 0.0
    %659 = vmatpush1.msra.mxu0 0.0
    %660 = vmatprep.mubr.f32.mxu0 0.0
    %661 = vmatmul.mubr.f32.gmra.mrb[0].mxu0 %v594
    %v662 = vpop.f32.mrb[0].mxu0
    %v663 = vadd.f32 %v592, %v662
    %v664 = vpop.f32.mrb[0].mxu0
    %665 = vdwg.mxu0
    %v666 = vxor.u32 %v663, 2147483648
    %v667 = vmul.f32 %v666, 1.442695
    %v668 = vpow.pop %v667
    %v669 = vadd.f32 %v668, 1.0
    %v670 = vrcp.pop %v669
    %v671 = vmul.f32 1.0, %v670
    %v672 = vtanh.pop %v663
    %v673 = vmul.f32 %v671, %v577
    %675 = vrot.lane.b32.xlu0 %v672, 96
    %v676 = vpop.permute.xlu0 %675
    %v678 = vmul.f32 %v671, %v676
    %680 = vrot.lane.b32.xlu0 %v678, 96
    %v681 = vpop.permute.xlu0 %680
    %v683 = vadd.f32 %v673, %v681
    %v684 = vtanh.pop %v683
    %686 = vrot.lane.b32.xlu0 %v684, 96
    %v687 = vpop.permute.xlu0 %686
    %v689 = vmul.f32 %v671, %v687
    %691 = vrot.lane.b32.xlu0 %v689, 32
    %v692 = vpop.permute.xlu0 %691
    %s694 = scalar_lea.vmem [#allocation7], 10
    %695 = vst.msk [vmem:[%s694] sm:$0x3] %vm164, %v692
    %v696 = vmax.f32 %v590, %v692
    %s697 = scalar_lea.vmem [#allocation2], 12
    %v698 = vld [vmem:[%s697] sm:$0x3]
    %v700 = vsel %vm62, %v696, 0
    %702 = vmatprep.subr.mxu0 0.0
    %703 = vmatpush1.msra.mxu0 %v51
    %704 = vmatprep.subr.mxu0 0.0
    %705 = vmatpush1.msra.mxu0 %v52
    %706 = vmatprep.subr.mxu0 0.0
    %707 = vmatpush1.msra.mxu0 %v53
    %708 = vmatprep.subr.mxu0 0.0
    %709 = vmatpush1.msra.mxu0 %v54
    %710 = vmatprep.subr.mxu0 0.0
    %711 = vmatpush1.msra.mxu0 0.0
    %712 = vmatprep.subr.mxu0 0.0
    %713 = vmatpush1.msra.mxu0 0.0
    %714 = vmatprep.subr.mxu0 0.0
    %715 = vmatpush1.msra.mxu0 0.0
    %716 = vmatprep.subr.mxu0 0.0
    %717 = vmatpush1.msra.mxu0 0.0
    %718 = vmatprep.subr.mxu0 0.0
    %719 = vmatpush1.msra.mxu0 0.0
    %720 = vmatprep.subr.mxu0 0.0
    %721 = vmatpush1.msra.mxu0 0.0
    %722 = vmatprep.subr.mxu0 0.0
    %723 = vmatpush1.msra.mxu0 0.0
    %724 = vmatprep.subr.mxu0 0.0
    %725 = vmatpush1.msra.mxu0 0.0
    %726 = vmatprep.subr.mxu0 0.0
    %727 = vmatpush1.msra.mxu0 0.0
    %728 = vmatprep.subr.mxu0 0.0
    %729 = vmatpush1.msra.mxu0 0.0
    %730 = vmatprep.subr.mxu0 0.0
    %731 = vmatpush1.msra.mxu0 0.0
    %732 = vmatprep.subr.mxu0 0.0
    %733 = vmatpush1.msra.mxu0 0.0
    %734 = vmatprep.subr.mxu0 0.0
    %735 = vmatpush1.msra.mxu0 0.0
    %736 = vmatprep.subr.mxu0 0.0
    %737 = vmatpush1.msra.mxu0 0.0
    %738 = vmatprep.subr.mxu0 0.0
    %739 = vmatpush1.msra.mxu0 0.0
    %740 = vmatprep.subr.mxu0 0.0
    %741 = vmatpush1.msra.mxu0 0.0
    %742 = vmatprep.subr.mxu0 0.0
    %743 = vmatpush1.msra.mxu0 0.0
    %744 = vmatprep.subr.mxu0 0.0
    %745 = vmatpush1.msra.mxu0 0.0
    %746 = vmatprep.subr.mxu0 0.0
    %747 = vmatpush1.msra.mxu0 0.0
    %748 = vmatprep.subr.mxu0 0.0
    %749 = vmatpush1.msra.mxu0 0.0
    %750 = vmatprep.subr.mxu0 0.0
    %751 = vmatpush1.msra.mxu0 0.0
    %752 = vmatprep.subr.mxu0 0.0
    %753 = vmatpush1.msra.mxu0 0.0
    %754 = vmatprep.subr.mxu0 0.0
    %755 = vmatpush1.msra.mxu0 0.0
    %756 = vmatprep.subr.mxu0 0.0
    %757 = vmatpush1.msra.mxu0 0.0
    %758 = vmatprep.subr.mxu0 0.0
    %759 = vmatpush1.msra.mxu0 0.0
    %760 = vmatprep.subr.mxu0 0.0
    %761 = vmatpush1.msra.mxu0 0.0
    %762 = vmatprep.subr.mxu0 0.0
    %763 = vmatpush1.msra.mxu0 0.0
    %764 = vmatprep.subr.mxu0 0.0
    %765 = vmatpush1.msra.mxu0 0.0
    %766 = vmatprep.mubr.f32.mxu0 0.0
    %767 = vmatmul.mubr.f32.gmra.mrb[0].mxu0 %v700
    %v768 = vpop.f32.mrb[0].mxu0
    %v769 = vadd.f32 %v698, %v768
    %v770 = vpop.f32.mrb[0].mxu0
    %771 = vdwg.mxu0
    %v772 = vxor.u32 %v769, 2147483648
    %v773 = vmul.f32 %v772, 1.442695
    %v774 = vpow.pop %v773
    %v775 = vadd.f32 %v774, 1.0
    %v776 = vrcp.pop %v775
    %v777 = vmul.f32 1.0, %v776
    %v778 = vtanh.pop %v769
    %v779 = vmul.f32 %v777, %v683
    %781 = vrot.lane.b32.xlu0 %v778, 96
    %v782 = vpop.permute.xlu0 %781
    %v784 = vmul.f32 %v777, %v782
    %786 = vrot.lane.b32.xlu0 %v784, 96
    %v787 = vpop.permute.xlu0 %786
    %v789 = vadd.f32 %v779, %v787
    %v790 = vtanh.pop %v789
    %792 = vrot.lane.b32.xlu0 %v790, 96
    %v793 = vpop.permute.xlu0 %792
    %v795 = vmul.f32 %v777, %v793
    %797 = vrot.lane.b32.xlu0 %v795, 32
    %v798 = vpop.permute.xlu0 %797
    %s800 = scalar_lea.vmem [#allocation7], 12
    %801 = vst.msk [vmem:[%s800] sm:$0x3] %vm164, %v798
    %v802 = vmax.f32 %v696, %v798
    %s803 = scalar_lea.vmem [#allocation2], 14
    %v804 = vld [vmem:[%s803] sm:$0x3]
    %v806 = vsel %vm62, %v802, 0
    %808 = vmatprep.subr.mxu0 0.0
    %809 = vmatpush1.msra.mxu0 %v51
    %810 = vmatprep.subr.mxu0 0.0
    %811 = vmatpush1.msra.mxu0 %v52
    %812 = vmatprep.subr.mxu0 0.0
    %813 = vmatpush1.msra.mxu0 %v53
    %814 = vmatprep.subr.mxu0 0.0
    %815 = vmatpush1.msra.mxu0 %v54
    %816 = vmatprep.subr.mxu0 0.0
    %817 = vmatpush1.msra.mxu0 0.0
    %818 = vmatprep.subr.mxu0 0.0
    %819 = vmatpush1.msra.mxu0 0.0
    %820 = vmatprep.subr.mxu0 0.0
    %821 = vmatpush1.msra.mxu0 0.0
    %822 = vmatprep.subr.mxu0 0.0
    %823 = vmatpush1.msra.mxu0 0.0
    %824 = vmatprep.subr.mxu0 0.0
    %825 = vmatpush1.msra.mxu0 0.0
    %826 = vmatprep.subr.mxu0 0.0
    %827 = vmatpush1.msra.mxu0 0.0
    %828 = vmatprep.subr.mxu0 0.0
    %829 = vmatpush1.msra.mxu0 0.0
    %830 = vmatprep.subr.mxu0 0.0
    %831 = vmatpush1.msra.mxu0 0.0
    %832 = vmatprep.subr.mxu0 0.0
    %833 = vmatpush1.msra.mxu0 0.0
    %834 = vmatprep.subr.mxu0 0.0
    %835 = vmatpush1.msra.mxu0 0.0
    %836 = vmatprep.subr.mxu0 0.0
    %837 = vmatpush1.msra.mxu0 0.0
    %838 = vmatprep.subr.mxu0 0.0
    %839 = vmatpush1.msra.mxu0 0.0
    %840 = vmatprep.subr.mxu0 0.0
    %841 = vmatpush1.msra.mxu0 0.0
    %842 = vmatprep.subr.mxu0 0.0
    %843 = vmatpush1.msra.mxu0 0.0
    %844 = vmatprep.subr.mxu0 0.0
    %845 = vmatpush1.msra.mxu0 0.0
    %846 = vmatprep.subr.mxu0 0.0
    %847 = vmatpush1.msra.mxu0 0.0
    %848 = vmatprep.subr.mxu0 0.0
    %849 = vmatpush1.msra.mxu0 0.0
    %850 = vmatprep.subr.mxu0 0.0
    %851 = vmatpush1.msra.mxu0 0.0
    %852 = vmatprep.subr.mxu0 0.0
    %853 = vmatpush1.msra.mxu0 0.0
    %854 = vmatprep.subr.mxu0 0.0
    %855 = vmatpush1.msra.mxu0 0.0
    %856 = vmatprep.subr.mxu0 0.0
    %857 = vmatpush1.msra.mxu0 0.0
    %858 = vmatprep.subr.mxu0 0.0
    %859 = vmatpush1.msra.mxu0 0.0
    %860 = vmatprep.subr.mxu0 0.0
    %861 = vmatpush1.msra.mxu0 0.0
    %862 = vmatprep.subr.mxu0 0.0
    %863 = vmatpush1.msra.mxu0 0.0
    %864 = vmatprep.subr.mxu0 0.0
    %865 = vmatpush1.msra.mxu0 0.0
    %866 = vmatprep.subr.mxu0 0.0
    %867 = vmatpush1.msra.mxu0 0.0
    %868 = vmatprep.subr.mxu0 0.0
    %869 = vmatpush1.msra.mxu0 0.0
    %870 = vmatprep.subr.mxu0 0.0
    %871 = vmatpush1.msra.mxu0 0.0
    %872 = vmatprep.mubr.f32.mxu0 0.0
    %873 = vmatmul.mubr.f32.gmra.mrb[0].mxu0 %v806
    %v874 = vpop.f32.mrb[0].mxu0
    %v875 = vadd.f32 %v804, %v874
    %v876 = vpop.f32.mrb[0].mxu0
    %877 = vdwg.mxu0
    %v878 = vxor.u32 %v875, 2147483648
    %v879 = vmul.f32 %v878, 1.442695
    %v880 = vpow.pop %v879
    %v881 = vadd.f32 %v880, 1.0
    %v882 = vrcp.pop %v881
    %v883 = vmul.f32 1.0, %v882
    %v884 = vtanh.pop %v875
    %v885 = vmul.f32 %v883, %v789
    %887 = vrot.lane.b32.xlu0 %v884, 96
    %v888 = vpop.permute.xlu0 %887
    %v890 = vmul.f32 %v883, %v888
    %892 = vrot.lane.b32.xlu0 %v890, 96
    %v893 = vpop.permute.xlu0 %892
    %v895 = vadd.f32 %v885, %v893
    %v896 = vtanh.pop %v895
    %898 = vrot.lane.b32.xlu0 %v896, 96
    %v899 = vpop.permute.xlu0 %898
    %v901 = vmul.f32 %v883, %v899
    %903 = vrot.lane.b32.xlu0 %v901, 32
    %v904 = vpop.permute.xlu0 %903
    %s906 = scalar_lea.vmem [#allocation7], 14
    %907 = vst.msk [vmem:[%s906] sm:$0x3] %vm164, %v904
    %v908 = vmax.f32 %v802, %v904
    %909 = vst.msk [vmem:[#allocation8] sm:$0x3] %vm164, %v908
    %910 = vst.msk [vmem:[#allocation10] sm:$0x3] %vm164, %v895
    // Predicated region
    $region22: #{tpu_custom_call.1} parent=1 // pred_check
      _
    $region23: #{tpu_custom_call.1} parent=1 // pred_check_branch
      %912 = sbr.rel (0) target = $region25
    $region24: #{tpu_custom_call.1} parent=1 // pred_region
      %s914 = ssub.s32 256, 256
      %915 = vsyncadd [#allocation4], %s914
      %s916 = sshll.u32 [#allocation7], 4
      %s917 = int_to_ptr.vmem [resolvable:$true] %s916
      %922 = dma.vmem_to_hbm [thread:$0]  %s917, 256, %s2, [#allocation4], 32, 32, 2
    $region25: #{tpu_custom_call.1} parent=1 // pred_fallthru
      _
    // Predicated region
    $region26: #{tpu_custom_call.1} parent=1 // pred_check
      _
    $region27: #{tpu_custom_call.1} parent=1 // pred_check_branch
      %924 = sbr.rel (0) target = $region29
    $region28: #{tpu_custom_call.1} parent=1 // pred_region
      %s926 = ssub.s32 32, 32
      %927 = vsyncadd [#allocation9], %s926
      %s929 = sshll.u32 [#allocation8], 4
      %s930 = int_to_ptr.vmem [resolvable:$true] %s929
      %932 = dma.vmem_to_hbm [thread:$0]  %s930, 32, %s3, [#allocation9]
    $region29: #{tpu_custom_call.1} parent=1 // pred_fallthru
      _
    // Predicated region
    $region30: #{tpu_custom_call.1} parent=1 // pred_check
      _
    $region31: #{tpu_custom_call.1} parent=1 // pred_check_branch
      %934 = sbr.rel (0) target = $region33
    $region32: #{tpu_custom_call.1} parent=1 // pred_region
      %s936 = ssub.s32 32, 32
      %937 = vsyncadd [#allocation9], %s936
      %s939 = sshll.u32 [#allocation10], 4
      %s940 = int_to_ptr.vmem [resolvable:$true] %s939
      %942 = dma.vmem_to_hbm [thread:$0]  %s940, 32, %s4, [#allocation9]
    $region33: #{tpu_custom_call.1} parent=1 // pred_fallthru
      _
    // Predicated region
    $region34: #{tpu_custom_call.1} parent=1 // pred_check
      _
    $region35: #{tpu_custom_call.1} parent=1 // pred_check_branch
      %944 = sbr.rel (0) target = $region37
    $region36: #{tpu_custom_call.1} parent=1 // pred_region
      %945 = dma.done [#allocation4], 256
    $region37: #{tpu_custom_call.1} parent=1 // pred_fallthru
      _
    // Predicated region
    $region38: #{tpu_custom_call.1} parent=1 // pred_check
      _
    $region39: #{tpu_custom_call.1} parent=1 // pred_check_branch
      %947 = sbr.rel (0) target = $region41
    $region40: #{tpu_custom_call.1} parent=1 // pred_region
      %948 = dma.done [#allocation9], 32
    $region41: #{tpu_custom_call.1} parent=1 // pred_fallthru
      _
    // Predicated region
    $region42: #{tpu_custom_call.1} parent=1 // pred_check
      _
    $region43: #{tpu_custom_call.1} parent=1 // pred_check_branch
      %950 = sbr.rel (0) target = $region45
    $region44: #{tpu_custom_call.1} parent=1 // pred_region
      %951 = dma.done [#allocation9], 32
    $region45: #{tpu_custom_call.1} parent=1 // pred_fallthru
      _
    %952 = vsyncpa [#allocation3], 1
    %953 = vsyncpa [#allocation6], 1
    %954 = vsyncpa [#allocation4], 1
    %955 = vsyncpa [#allocation9], 1

</llo_original>
